<compile_context>
chip_gen: v7x
topology: tpu7x:2x2x1
jax: 0.10.0
libtpu: 0.0.40
codegen_flags: <defaults>
</compile_context>

<pallas_src>
import math

import jax
import jax.numpy as jnp
from jax.experimental import pallas as pl
from jax.experimental.pallas import tpu as pltpu


# ---------------------------------------------------------------------------
# Positional encoding (full-table version, used only by the pure-JAX reference)
# ---------------------------------------------------------------------------
def get_2d_sin_cos_positional_encoding(H, W, dim):
    assert dim % 2 == 0
    y_embed = jnp.broadcast_to(jnp.arange(H, dtype=jnp.float32)[:, None], (H, W))
    x_embed = jnp.broadcast_to(jnp.arange(W, dtype=jnp.float32)[None, :], (H, W))
    div_term = jnp.exp(
        jnp.arange(0, dim, 2, dtype=jnp.float32) * -(math.log(10000.0) / dim)
    )
    pe = jnp.zeros((H, W, dim), dtype=jnp.float32)
    pe = pe.at[:, :, 0::2].set(jnp.sin(x_embed[..., None] * div_term))
    pe = pe.at[:, :, 1::2].set(jnp.cos(y_embed[..., None] * div_term))
    return pe


# ---------------------------------------------------------------------------
# Fused Pallas kernel: (vectorized) gather -> MLP -> scatter into BEV map
# ---------------------------------------------------------------------------
def _bev_kernel(lin_ref, n_ref,                                   # scalar prefetch (SMEM)
                sin_ref, cos_ref, oid_ref, objf_ref,              # VMEM inputs
                w1s_ref, w1c_ref, w1o_ref, b1_ref, w2_ref, b2_ref,
                bev_ref,                                          # VMEM output [H*W, out_dim]
                out_sc):                                          # VMEM scratch [n_max, out_dim]
    n = n_ref[0]
    n_max = out_sc.shape[0]
    n_obj = objf_ref.shape[0]

    # Zero the full BEV output block (torch.zeros(H, W, out_dim)).
    bev_ref[...] = jnp.zeros_like(bev_ref)

    # --- vectorized object-feature gather (one-hot matmul on the MXU) ------
    # Replaces the previous per-row scalar-loop gather (the kernel's former
    # hottest region).  Padded rows select object 0 (harmless; never scattered).
    onehot = (jax.lax.broadcasted_iota(jnp.int32, (n_max, n_obj), 1)
              == oid_ref[...]).astype(jnp.float32)
    obj_g = jnp.dot(onehot, objf_ref[...], preferred_element_type=jnp.float32)

    # --- fused 2-layer MLP --------------------------------------------------
    # The [pos | obj] feature concat is folded into split matmuls:
    #   fused @ W1 == sin_part @ W1[0:pos_dim:2]
    #               + cos_part @ W1[1:pos_dim:2]
    #               + obj      @ W1[pos_dim:]
    h = (jnp.dot(sin_ref[...], w1s_ref[...], preferred_element_type=jnp.float32)
         + jnp.dot(cos_ref[...], w1c_ref[...], preferred_element_type=jnp.float32)
         + jnp.dot(obj_g, w1o_ref[...], preferred_element_type=jnp.float32)
         + b1_ref[...])
    h = jnp.maximum(h, 0.0)                      # f32 epilogue (v5e-safe)
    out_sc[...] = (jnp.dot(h, w2_ref[...], preferred_element_type=jnp.float32)
                   + b2_ref[...])

    # --- O(n) scatter (dynamic trip count) ----------------------------------
    # Sequential -> deterministic last-write-wins for duplicate (y, x) cells,
    # matching PyTorch index assignment.  Only the n real rows are touched.
    @pl.loop(0, n)
    def _scatter(i):
        p = lin_ref[i]
        bev_ref[pl.ds(p, 1), :] = out_sc[pl.ds(i, 1), :]


# ---------------------------------------------------------------------------
# Module wrapper
# ---------------------------------------------------------------------------
class BEVFeatureGeneratorPallas:
    def __init__(self, bev_shape=(32, 32), pos_dim=64, obj_dim=64,
                 mlp_hidden=128, out_dim=64, n_max=128,
                 key=jax.random.PRNGKey(0)):
        assert pos_dim % 2 == 0
        self.H, self.W = bev_shape
        self.HW = self.H * self.W
        self.pos_dim = pos_dim
        self.hp = pos_dim // 2
        self.obj_dim = obj_dim
        self.hidden = mlp_hidden
        self.out_dim = out_dim
        self.n_max = n_max                      # fixed bucket -> no per-N recompiles

        # Same div_term as the PyTorch module's buffer construction.
        self.div_term = jnp.exp(
            jnp.arange(0, pos_dim, 2, dtype=jnp.float32)
            * -(math.log(10000.0) / pos_dim))   # [pos_dim // 2]

        d_in = pos_dim + obj_dim
        k1, k2, k3, k4 = jax.random.split(key, 4)
        lim1 = 1.0 / math.sqrt(d_in)
        lim2 = 1.0 / math.sqrt(mlp_hidden)
        self.w1 = jax.random.uniform(k1, (d_in, mlp_hidden), jnp.float32, -lim1, lim1)
        self.b1 = jax.random.uniform(k2, (1, mlp_hidden), jnp.float32, -lim1, lim1)
        self.w2 = jax.random.uniform(k3, (mlp_hidden, out_dim), jnp.float32, -lim2, lim2)
        self.b2 = jax.random.uniform(k4, (1, out_dim), jnp.float32, -lim2, lim2)

        # W1's pos rows pre-permuted host-side (feedback): even rows multiply
        # sin(x*div), odd rows multiply cos(y*div) -> no in-kernel interleave.
        self.w1_sin = self.w1[0:pos_dim:2]      # [pos_dim/2, hidden]
        self.w1_cos = self.w1[1:pos_dim:2]      # [pos_dim/2, hidden]
        self.w1_obj = self.w1[pos_dim:]         # [obj_dim,   hidden]

    # -- host-side glue (tiny per-row index / encoding arrays only) ----------
    def _prepare(self, object_grids, object_features):
        all_grids = jnp.concatenate(object_grids, axis=0).astype(jnp.int32)
        object_ids = jnp.concatenate(
            [jnp.full((g.shape[0],), i, dtype=jnp.int32)
             for i, g in enumerate(object_grids)])
        n = int(all_grids.shape[0])
        assert n <= self.n_max, f"total grid cells {n} exceeds n_max={self.n_max}"
        pad = self.n_max - n

        y = all_grids[:, 0]
        x = all_grids[:, 1]
        lin_pad = jnp.pad(y * self.W + x, (0, pad))                 # [n_max]
        oid_pad = jnp.pad(object_ids, (0, pad)).reshape(self.n_max, 1)

        # Per-row positional encoding, deinterleaved into sin/cos halves.
        # Only the <= n_max used rows are computed; the [H*W, pos_dim] table is
        # never built or DMA'd (feedback: drop the pos-table transfer).
        x_f = jnp.pad(x, (0, pad)).astype(jnp.float32)[:, None]     # [n_max, 1]
        y_f = jnp.pad(y, (0, pad)).astype(jnp.float32)[:, None]
        sin_part = jnp.sin(x_f * self.div_term[None, :])            # [n_max, hp]
        cos_part = jnp.cos(y_f * self.div_term[None, :])            # [n_max, hp]

        # Object features padded to a 128-row multiple so the one-hot gather
        # matmul has clean lane/sublane-aligned operand shapes.
        num_obj = object_features.shape[0]
        n_obj_pad = max(128, ((num_obj + 127) // 128) * 128)
        objf = jnp.pad(object_features.astype(jnp.float32),
                       ((0, n_obj_pad - num_obj), (0, 0)))

        n_arr = jnp.array([n], dtype=jnp.int32)
        return lin_pad, n_arr, sin_part, cos_part, oid_pad, objf

    def __call__(self, object_grids, object_features):
        """
        object_grids: list of int32 arrays [num_grids_i, 2] (y, x)
        object_features: float32 [num_objects, obj_dim]
        returns: [H, W, out_dim]
        """
        lin_pad, n_arr, sin_part, cos_part, oid_pad, objf = self._prepare(
            object_grids, object_features)
        n_obj_pad = objf.shape[0]

        flops = 2 * self.n_max * (n_obj_pad * self.obj_dim
                                  + self.pos_dim * self.hidden
                                  + self.obj_dim * self.hidden
                                  + self.hidden * self.out_dim)
        bytes_accessed = 4 * (2 * self.n_max * self.hp + self.n_max * 2 + 1
                              + n_obj_pad * self.obj_dim
                              + (self.pos_dim + self.obj_dim) * self.hidden
                              + self.hidden
                              + self.hidden * self.out_dim + self.out_dim
                              + self.HW * self.out_dim)

        full = lambda *_: (0, 0)   # every operand is a single full block
        bev_flat = pl.pallas_call(
            _bev_kernel,
            out_shape=jax.ShapeDtypeStruct((self.HW, self.out_dim), jnp.float32),
            grid_spec=pltpu.PrefetchScalarGridSpec(
                num_scalar_prefetch=2,
                grid=(1,),   # single block: tiny N -> avoid per-step pipeline overhead
                in_specs=[
                    pl.BlockSpec((self.n_max, self.hp), full),        # sin_part
                    pl.BlockSpec((self.n_max, self.hp), full),        # cos_part
                    pl.BlockSpec((self.n_max, 1), full),              # object ids
                    pl.BlockSpec((n_obj_pad, self.obj_dim), full),    # object feats
                    pl.BlockSpec((self.hp, self.hidden), full),       # W1 sin rows
                    pl.BlockSpec((self.hp, self.hidden), full),       # W1 cos rows
                    pl.BlockSpec((self.obj_dim, self.hidden), full),  # W1 obj rows
                    pl.BlockSpec((1, self.hidden), full),             # b1
                    pl.BlockSpec((self.hidden, self.out_dim), full),  # W2
                    pl.BlockSpec((1, self.out_dim), full),            # b2
                ],
                out_specs=pl.BlockSpec((self.HW, self.out_dim), full),
                scratch_shapes=[
                    pltpu.VMEM((self.n_max, self.out_dim), jnp.float32),
                ],
            ),
            compiler_params=pltpu.CompilerParams(
                dimension_semantics=("arbitrary",)),
            cost_estimate=pl.CostEstimate(
                flops=flops, transcendentals=0, bytes_accessed=bytes_accessed),
        )(lin_pad, n_arr, sin_part, cos_part, oid_pad, objf,
          self.w1_sin, self.w1_cos, self.w1_obj, self.b1, self.w2, self.b2)

        return bev_flat.reshape(self.H, self.W, self.out_dim)

    # -- pure-JAX reference (mirrors the PyTorch module exactly) -------------
    def reference(self, object_grids, object_features):
        pe = get_2d_sin_cos_positional_encoding(self.H, self.W, self.pos_dim)
        all_grids = jnp.concatenate(object_grids, axis=0).astype(jnp.int32)
        object_ids = jnp.concatenate(
            [jnp.full((g.shape[0],), i, dtype=jnp.int32)
             for i, g in enumerate(object_grids)])
        y, x = all_grids[:, 0], all_grids[:, 1]
        pos_feats = pe[y, x]
        obj_feats = object_features[object_ids]
        fused = jnp.concatenate([pos_feats, obj_feats], axis=-1)
        h = jnp.maximum(fused @ self.w1 + self.b1[0], 0.0)
        grid_feats = h @ self.w2 + self.b2[0]
        bev = jnp.zeros((self.H, self.W, self.out_dim), dtype=jnp.float32)
        bev = bev.at[y, x].set(grid_feats)
        return bev


if __name__ == "__main__":
    key = jax.random.PRNGKey(0)
    k_mod, k_feat = jax.random.split(key, 2)

    H, W = 32, 32
    pos_dim, obj_dim, mlp_hidden, out_dim = 64, 64, 128, 64

    module = BEVFeatureGeneratorPallas(
        bev_shape=(H, W), pos_dim=pos_dim, obj_dim=obj_dim,
        mlp_hidden=mlp_hidden, out_dim=out_dim, n_max=128, key=k_mod,
    )

    # Two objects, each occupying a handful of unique (y, x) grid cells.
    num_objects = 2
    object_features = jax.random.normal(k_feat, (num_objects, obj_dim), jnp.float32)
    grids_obj0 = jnp.array([[1, 2], [1, 3], [2, 2], [2, 3], [3, 4]], dtype=jnp.int32)
    grids_obj1 = jnp.array([[10, 11], [10, 12], [11, 11], [12, 13], [9, 9], [8, 8], [7, 7]],
                           dtype=jnp.int32)
    object_grids = [grids_obj0, grids_obj1]

    bev = jax.block_until_ready(module(object_grids, object_features))
    bev_ref = jax.block_until_ready(module.reference(object_grids, object_features))

    assert bev.shape == (H, W, out_dim)
    assert jnp.allclose(bev, bev_ref, atol=1e-4, rtol=1e-4), "mismatch vs reference"

    print("KERNEL_OK")
</pallas_src>

<mosaic_0001>
module attributes {stable_mosaic.version = 11 : i64} {
  func.func @_bev_kernel(%arg0: i32, %arg1: memref<128xi32, #tpu.memory_space<smem>>, %arg2: memref<1xi32, #tpu.memory_space<smem>>, %arg3: memref<128x32xf32, #tpu.memory_space<vmem>>, %arg4: memref<128x32xf32, #tpu.memory_space<vmem>>, %arg5: memref<128x1xi32, #tpu.memory_space<vmem>>, %arg6: memref<128x64xf32, #tpu.memory_space<vmem>>, %arg7: memref<32x128xf32, #tpu.memory_space<vmem>>, %arg8: memref<32x128xf32, #tpu.memory_space<vmem>>, %arg9: memref<64x128xf32, #tpu.memory_space<vmem>>, %arg10: memref<1x128xf32, #tpu.memory_space<vmem>>, %arg11: memref<128x64xf32, #tpu.memory_space<vmem>>, %arg12: memref<1x64xf32, #tpu.memory_space<vmem>>, %arg13: memref<1024x64xf32, #tpu.memory_space<vmem>>, %arg14: memref<128x64xf32, #tpu.memory_space<vmem>>) attributes {dimension_semantics = [#tpu.dimension_semantics<arbitrary>], iteration_bounds = array<i64: 1>, scalar_prefetch = 2 : i64, scratch_operands = 1 : i64, tpu.core_type = #tpu.core_type<tc>, window_params = [{pipeline_mode = #tpu.pipeline_mode<synchronous>, transform_indices = @transform_0, window_bounds = array<i64: 128, 32>}, {pipeline_mode = #tpu.pipeline_mode<synchronous>, transform_indices = @transform_1, window_bounds = array<i64: 128, 32>}, {pipeline_mode = #tpu.pipeline_mode<synchronous>, transform_indices = @transform_2, window_bounds = array<i64: 128, 1>}, {pipeline_mode = #tpu.pipeline_mode<synchronous>, transform_indices = @transform_3, window_bounds = array<i64: 128, 64>}, {pipeline_mode = #tpu.pipeline_mode<synchronous>, transform_indices = @transform_4, window_bounds = array<i64: 32, 128>}, {pipeline_mode = #tpu.pipeline_mode<synchronous>, transform_indices = @transform_5, window_bounds = array<i64: 32, 128>}, {pipeline_mode = #tpu.pipeline_mode<synchronous>, transform_indices = @transform_6, window_bounds = array<i64: 64, 128>}, {pipeline_mode = #tpu.pipeline_mode<synchronous>, transform_indices = @transform_7, window_bounds = array<i64: 1, 128>}, {pipeline_mode = #tpu.pipeline_mode<synchronous>, transform_indices = @transform_8, window_bounds = array<i64: 128, 64>}, {pipeline_mode = #tpu.pipeline_mode<synchronous>, transform_indices = @transform_9, window_bounds = array<i64: 1, 64>}, {pipeline_mode = #tpu.pipeline_mode<synchronous>, transform_indices = @transform_10, window_bounds = array<i64: 1024, 64>}]} {
    %c0 = arith.constant 0 : index
    %0 = memref.load %arg2[%c0] : memref<1xi32, #tpu.memory_space<smem>>
    %cst = arith.constant 0.000000e+00 : f32
    %1 = vector.broadcast %cst : f32 to vector<1024x64xf32>
    %c0_0 = arith.constant 0 : index
    %c0_1 = arith.constant 0 : index
    %2 = vector.load %arg13[%c0_0, %c0_1] : memref<1024x64xf32, #tpu.memory_space<vmem>>, vector<1024x64xf32>
    tpu.vector_store %arg13[%c0_0, %c0_1], %1 {strides = array<i32>} : memref<1024x64xf32, #tpu.memory_space<vmem>>, vector<1024x64xf32>,
    %3 = tpu.iota {dimensions = array<i32: 1>} : vector<128x128xi32>
    %c0_2 = arith.constant 0 : index
    %c0_3 = arith.constant 0 : index
    %4 = vector.load %arg5[%c0_2, %c0_3] : memref<128x1xi32, #tpu.memory_space<vmem>>, vector<128x1xi32>
    %5 = vector.broadcast %4 : vector<128x1xi32> to vector<128x128xi32>
    %6 = arith.cmpi eq, %3, %5 : vector<128x128xi32>
    %7 = arith.extui %6 : vector<128x128xi1> to vector<128x128xi32>
    %8 = arith.sitofp %7 : vector<128x128xi32> to vector<128x128xf32>
    %c0_4 = arith.constant 0 : index
    %c0_5 = arith.constant 0 : index
    %9 = vector.load %arg6[%c0_4, %c0_5] : memref<128x64xf32, #tpu.memory_space<vmem>>, vector<128x64xf32>
    %cst_6 = arith.constant dense<0.000000e+00> : vector<128x64xf32>
    %10 = tpu.matmul %8, %9, %cst_6 {dimension_numbers = #tpu.dot_dimension_numbers<[1], [0], [0], [1], [0, 0, 1, 1], [], []>} : vector<128x128xf32>, vector<128x64xf32>, vector<128x64xf32> -> vector<128x64xf32>
    %c0_7 = arith.constant 0 : index
    %c0_8 = arith.constant 0 : index
    %11 = vector.load %arg3[%c0_7, %c0_8] : memref<128x32xf32, #tpu.memory_space<vmem>>, vector<128x32xf32>
    %c0_9 = arith.constant 0 : index
    %c0_10 = arith.constant 0 : index
    %12 = vector.load %arg7[%c0_9, %c0_10] : memref<32x128xf32, #tpu.memory_space<vmem>>, vector<32x128xf32>
    %cst_11 = arith.constant dense<0.000000e+00> : vector<128x128xf32>
    %13 = tpu.matmul %11, %12, %cst_11 {dimension_numbers = #tpu.dot_dimension_numbers<[1], [0], [0], [1], [0, 0, 1, 1], [], []>} : vector<128x32xf32>, vector<32x128xf32>, vector<128x128xf32> -> vector<128x128xf32>
    %c0_12 = arith.constant 0 : index
    %c0_13 = arith.constant 0 : index
    %14 = vector.load %arg4[%c0_12, %c0_13] : memref<128x32xf32, #tpu.memory_space<vmem>>, vector<128x32xf32>
    %c0_14 = arith.constant 0 : index
    %c0_15 = arith.constant 0 : index
    %15 = vector.load %arg8[%c0_14, %c0_15] : memref<32x128xf32, #tpu.memory_space<vmem>>, vector<32x128xf32>
    %cst_16 = arith.constant dense<0.000000e+00> : vector<128x128xf32>
    %16 = tpu.matmul %14, %15, %cst_16 {dimension_numbers = #tpu.dot_dimension_numbers<[1], [0], [0], [1], [0, 0, 1, 1], [], []>} : vector<128x32xf32>, vector<32x128xf32>, vector<128x128xf32> -> vector<128x128xf32>
    %17 = arith.addf %13, %16 : vector<128x128xf32>
    %c0_17 = arith.constant 0 : index
    %c0_18 = arith.constant 0 : index
    %18 = vector.load %arg9[%c0_17, %c0_18] : memref<64x128xf32, #tpu.memory_space<vmem>>, vector<64x128xf32>
    %cst_19 = arith.constant dense<0.000000e+00> : vector<128x128xf32>
    %19 = tpu.matmul %10, %18, %cst_19 {dimension_numbers = #tpu.dot_dimension_numbers<[1], [0], [0], [1], [0, 0, 1, 1], [], []>} : vector<128x64xf32>, vector<64x128xf32>, vector<128x128xf32> -> vector<128x128xf32>
    %20 = arith.addf %17, %19 : vector<128x128xf32>
    %c0_20 = arith.constant 0 : index
    %c0_21 = arith.constant 0 : index
    %21 = vector.load %arg10[%c0_20, %c0_21] : memref<1x128xf32, #tpu.memory_space<vmem>>, vector<1x128xf32>
    %22 = vector.broadcast %21 : vector<1x128xf32> to vector<128x128xf32>
    %23 = arith.addf %20, %22 : vector<128x128xf32>
    %cst_22 = arith.constant 0.000000e+00 : f32
    %24 = vector.broadcast %cst_22 : f32 to vector<128x128xf32>
    %25 = arith.maximumf %23, %24 : vector<128x128xf32>
    %c0_23 = arith.constant 0 : index
    %c0_24 = arith.constant 0 : index
    %26 = vector.load %arg11[%c0_23, %c0_24] : memref<128x64xf32, #tpu.memory_space<vmem>>, vector<128x64xf32>
    %cst_25 = arith.constant dense<0.000000e+00> : vector<128x64xf32>
    %27 = tpu.matmul %25, %26, %cst_25 {dimension_numbers = #tpu.dot_dimension_numbers<[1], [0], [0], [1], [0, 0, 1, 1], [], []>} : vector<128x128xf32>, vector<128x64xf32>, vector<128x64xf32> -> vector<128x64xf32>
    %c0_26 = arith.constant 0 : index
    %c0_27 = arith.constant 0 : index
    %28 = vector.load %arg12[%c0_26, %c0_27] : memref<1x64xf32, #tpu.memory_space<vmem>>, vector<1x64xf32>
    %29 = vector.broadcast %28 : vector<1x64xf32> to vector<128x64xf32>
    %30 = arith.addf %27, %29 : vector<128x64xf32>
    %c0_28 = arith.constant 0 : index
    %c0_29 = arith.constant 0 : index
    %31 = vector.load %arg14[%c0_28, %c0_29] : memref<128x64xf32, #tpu.memory_space<vmem>>, vector<128x64xf32>
    tpu.vector_store %arg14[%c0_28, %c0_29], %30 {strides = array<i32>} : memref<128x64xf32, #tpu.memory_space<vmem>>, vector<128x64xf32>,
    %c0_i32 = arith.constant 0 : i32
    %32 = arith.subi %0, %c0_i32 : i32
    %c1_i32 = arith.constant 1 : i32
    %c1_i32_30 = arith.constant 1 : i32
    %33 = arith.subi %c1_i32, %c1_i32_30 : i32
    %34 = arith.addi %32, %33 : i32
    %c1_i32_31 = arith.constant 1 : i32
    %35 = arith.divsi %34, %c1_i32_31 : i32
    %c1_i32_32 = arith.constant 1 : i32
    %c0_i32_33 = arith.constant 0 : i32
    %c0_i32_34 = arith.constant 0 : i32
    %36 = arith.subi %35, %c0_i32_34 : i32
    %37 = arith.addi %c0_i32_34, %36 : i32
    %c1_i32_35 = arith.constant 1 : i32
    scf.for %arg15 = %c0_i32_34 to %37 step %c1_i32_35  : i32 {
      %38 = arith.muli %arg15, %c1_i32_32 : i32
      %39 = arith.addi %c0_i32_33, %38 : i32
      %40 = arith.index_cast %39 : i32 to index
      %41 = memref.load %arg1[%40] : memref<128xi32, #tpu.memory_space<smem>>
      %42 = arith.index_cast %39 : i32 to index
      %c0_36 = arith.constant 0 : index
      %43 = vector.load %arg14[%42, %c0_36] : memref<128x64xf32, #tpu.memory_space<vmem>>, vector<1x64xf32>
      %44 = arith.index_cast %41 : i32 to index
      %c0_37 = arith.constant 0 : index
      %45 = vector.load %arg13[%44, %c0_37] : memref<1024x64xf32, #tpu.memory_space<vmem>>, vector<1x64xf32>
      tpu.vector_store %arg13[%44, %c0_37], %43 {strides = array<i32>} : memref<1024x64xf32, #tpu.memory_space<vmem>>, vector<1x64xf32>,
    }
    return
  }
  func.func @transform_0(%arg0: i32, %arg1: memref<128xi32, #tpu.memory_space<smem>>, %arg2: memref<1xi32, #tpu.memory_space<smem>>) -> (i32, i32) {
    %c0_i32 = arith.constant 0 : i32
    %c0_i32_0 = arith.constant 0 : i32
    %c0_i32_1 = arith.constant 0 : i32
    return %c0_i32, %c0_i32_0 : i32, i32
  }
  func.func @transform_1(%arg0: i32, %arg1: memref<128xi32, #tpu.memory_space<smem>>, %arg2: memref<1xi32, #tpu.memory_space<smem>>) -> (i32, i32) {
    %c0_i32 = arith.constant 0 : i32
    %c0_i32_0 = arith.constant 0 : i32
    %c0_i32_1 = arith.constant 0 : i32
    return %c0_i32, %c0_i32_0 : i32, i32
  }
  func.func @transform_2(%arg0: i32, %arg1: memref<128xi32, #tpu.memory_space<smem>>, %arg2: memref<1xi32, #tpu.memory_space<smem>>) -> (i32, i32) {
    %c0_i32 = arith.constant 0 : i32
    %c0_i32_0 = arith.constant 0 : i32
    %c0_i32_1 = arith.constant 0 : i32
    return %c0_i32, %c0_i32_0 : i32, i32
  }
  func.func @transform_3(%arg0: i32, %arg1: memref<128xi32, #tpu.memory_space<smem>>, %arg2: memref<1xi32, #tpu.memory_space<smem>>) -> (i32, i32) {
    %c0_i32 = arith.constant 0 : i32
    %c0_i32_0 = arith.constant 0 : i32
    %c0_i32_1 = arith.constant 0 : i32
    return %c0_i32, %c0_i32_0 : i32, i32
  }
  func.func @transform_4(%arg0: i32, %arg1: memref<128xi32, #tpu.memory_space<smem>>, %arg2: memref<1xi32, #tpu.memory_space<smem>>) -> (i32, i32) {
    %c0_i32 = arith.constant 0 : i32
    %c0_i32_0 = arith.constant 0 : i32
    %c0_i32_1 = arith.constant 0 : i32
    return %c0_i32, %c0_i32_0 : i32, i32
  }
  func.func @transform_5(%arg0: i32, %arg1: memref<128xi32, #tpu.memory_space<smem>>, %arg2: memref<1xi32, #tpu.memory_space<smem>>) -> (i32, i32) {
    %c0_i32 = arith.constant 0 : i32
    %c0_i32_0 = arith.constant 0 : i32
    %c0_i32_1 = arith.constant 0 : i32
    return %c0_i32, %c0_i32_0 : i32, i32
  }
  func.func @transform_6(%arg0: i32, %arg1: memref<128xi32, #tpu.memory_space<smem>>, %arg2: memref<1xi32, #tpu.memory_space<smem>>) -> (i32, i32) {
    %c0_i32 = arith.constant 0 : i32
    %c0_i32_0 = arith.constant 0 : i32
    %c0_i32_1 = arith.constant 0 : i32
    return %c0_i32, %c0_i32_0 : i32, i32
  }
  func.func @transform_7(%arg0: i32, %arg1: memref<128xi32, #tpu.memory_space<smem>>, %arg2: memref<1xi32, #tpu.memory_space<smem>>) -> (i32, i32) {
    %c0_i32 = arith.constant 0 : i32
    %c0_i32_0 = arith.constant 0 : i32
    %c0_i32_1 = arith.constant 0 : i32
    return %c0_i32, %c0_i32_0 : i32, i32
  }
  func.func @transform_8(%arg0: i32, %arg1: memref<128xi32, #tpu.memory_space<smem>>, %arg2: memref<1xi32, #tpu.memory_space<smem>>) -> (i32, i32) {
    %c0_i32 = arith.constant 0 : i32
    %c0_i32_0 = arith.constant 0 : i32
    %c0_i32_1 = arith.constant 0 : i32
    return %c0_i32, %c0_i32_0 : i32, i32
  }
  func.func @transform_9(%arg0: i32, %arg1: memref<128xi32, #tpu.memory_space<smem>>, %arg2: memref<1xi32, #tpu.memory_space<smem>>) -> (i32, i32) {
    %c0_i32 = arith.constant 0 : i32
    %c0_i32_0 = arith.constant 0 : i32
    %c0_i32_1 = arith.constant 0 : i32
    return %c0_i32, %c0_i32_0 : i32, i32
  }
  func.func @transform_10(%arg0: i32, %arg1: memref<128xi32, #tpu.memory_space<smem>>, %arg2: memref<1xi32, #tpu.memory_space<smem>>) -> (i32, i32) {
    %c0_i32 = arith.constant 0 : i32
    %c0_i32_0 = arith.constant 0 : i32
    %c0_i32_1 = arith.constant 0 : i32
    return %c0_i32, %c0_i32_0 : i32, i32
  }
}

</mosaic_0001>

<llo_original>
// kernel: tpu_custom_call.1
$region0: #{tpu_custom_call.1}
  #allocation0 [shape = 'u32[]', space=smem, size = 0x4, offset = 0x4, fixed_abs, tag = 'smem constant byte address 0x4 - core index']
  #allocation1 [shape = 'u32[144,128]{1,0:T(1,128)}', space=vmem, size = 0x12000, scoped, tag = 'internal scratch']
  #allocation2 [shape = 'f32[128,64]{1,0:T(8,128)}', space=vmem, size = 0x10000, scoped, tag = 'scratch operand']
  #allocation3 [shape = 's32[1]{0}', space=sflag, size = 0x4, scoped, tag = 'scoped memory for tpu_custom_call.1']
  #allocation4 [shape = 'u8[512]{0}', space=smem, size = 0x200, scoped, tag = 'prefetched SMEM operand 0']
  #allocation5 [shape = 's32[1]{0:T(128)S(6)}', space=smem, size = 0x200, scoped, tag = 'prefetched SMEM operand 1']
  %s0 = inlined_call_operand.vmem [shape: s32[128], index: 0, kind: input, shape index: {}]
  %s1 = inlined_call_operand.<no memory space> [shape: s32[1], index: 1, kind: input, shape index: {}]
  %s2 = inlined_call_operand.vmem [shape: f32[128,32], index: 2, kind: input, shape index: {}]
  %s3 = inlined_call_operand.vmem [shape: f32[128,32], index: 3, kind: input, shape index: {}]
  %s4 = inlined_call_operand.vmem [shape: s32[128,1], index: 4, kind: input, shape index: {}]
  %s5 = inlined_call_operand.vmem [shape: f32[128,64], index: 5, kind: input, shape index: {}]
  %s6 = inlined_call_operand.vmem [shape: f32[32,128], index: 6, kind: input, shape index: {}]
  %s7 = inlined_call_operand.vmem [shape: f32[32,128], index: 7, kind: input, shape index: {}]
  %s8 = inlined_call_operand.vmem [shape: f32[64,128], index: 8, kind: input, shape index: {}]
  %s9 = inlined_call_operand.vmem [shape: f32[1,128], index: 9, kind: input, shape index: {}]
  %s10 = inlined_call_operand.vmem [shape: f32[128,64], index: 10, kind: input, shape index: {}]
  %s11 = inlined_call_operand.vmem [shape: f32[1,64], index: 11, kind: input, shape index: {}]
  %s12 = inlined_call_operand.vmem [shape: f32[1024,64], index: 12, kind: output, shape index: {}]
  %s13 = sld [smem:[#allocation0]]
  $region57: #{tpu_custom_call.1} parent=0
    _
  %s15 = ssub.s32 1, %s13
  %s16 = scalar_select 0, %s15, %s13
  %s17 = sshll.u32 %s0, 4
  %s18 = int_to_ptr.vmem [resolvable:$true] %s17
  %20 = dma.vmem_to_smem %s18, 16, [#allocation4], [#allocation3]
  %21 = sst [smem:[#allocation5]] %s1
  %22 = dma.done [#allocation3], 16
  %23 = sfence
  // Predicated region
  $region2: #{tpu_custom_call.1} parent=0 // pred_check
    _
  $region3: #{tpu_custom_call.1} parent=0 // pred_check_branch
    %25 = sbr.rel (0) target = $region5
  $region4: #{tpu_custom_call.1} parent=0 // pred_region
    _
  $region5: #{tpu_custom_call.1} parent=0 // pred_fallthru
    _
  // Predicated region
  $region6: #{tpu_custom_call.1} parent=0 // pred_check
    _
  $region7: #{tpu_custom_call.1} parent=0 // pred_check_branch
    %27 = sbr.rel (0) target = $region9
  $region8: #{tpu_custom_call.1} parent=0 // pred_region
    _
  $region9: #{tpu_custom_call.1} parent=0 // pred_fallthru
    _
  // Predicated region
  $region10: #{tpu_custom_call.1} parent=0 // pred_check
    _
  $region11: #{tpu_custom_call.1} parent=0 // pred_check_branch
    %29 = sbr.rel (0) target = $region13
  $region12: #{tpu_custom_call.1} parent=0 // pred_region
    _
  $region13: #{tpu_custom_call.1} parent=0 // pred_fallthru
    _
  // Predicated region
  $region14: #{tpu_custom_call.1} parent=0 // pred_check
    _
  $region15: #{tpu_custom_call.1} parent=0 // pred_check_branch
    %31 = sbr.rel (0) target = $region17
  $region16: #{tpu_custom_call.1} parent=0 // pred_region
    _
  $region17: #{tpu_custom_call.1} parent=0 // pred_fallthru
    _
  // Predicated region
  $region18: #{tpu_custom_call.1} parent=0 // pred_check
    _
  $region19: #{tpu_custom_call.1} parent=0 // pred_check_branch
    %33 = sbr.rel (0) target = $region21
  $region20: #{tpu_custom_call.1} parent=0 // pred_region
    _
  $region21: #{tpu_custom_call.1} parent=0 // pred_fallthru
    _
  // Predicated region
  $region22: #{tpu_custom_call.1} parent=0 // pred_check
    _
  $region23: #{tpu_custom_call.1} parent=0 // pred_check_branch
    %35 = sbr.rel (0) target = $region25
  $region24: #{tpu_custom_call.1} parent=0 // pred_region
    _
  $region25: #{tpu_custom_call.1} parent=0 // pred_fallthru
    _
  // Predicated region
  $region26: #{tpu_custom_call.1} parent=0 // pred_check
    _
  $region27: #{tpu_custom_call.1} parent=0 // pred_check_branch
    %37 = sbr.rel (0) target = $region29
  $region28: #{tpu_custom_call.1} parent=0 // pred_region
    _
  $region29: #{tpu_custom_call.1} parent=0 // pred_fallthru
    _
  // Predicated region
  $region30: #{tpu_custom_call.1} parent=0 // pred_check
    _
  $region31: #{tpu_custom_call.1} parent=0 // pred_check_branch
    %39 = sbr.rel (0) target = $region33
  $region32: #{tpu_custom_call.1} parent=0 // pred_region
    _
  $region33: #{tpu_custom_call.1} parent=0 // pred_fallthru
    _
  // Predicated region
  $region34: #{tpu_custom_call.1} parent=0 // pred_check
    _
  $region35: #{tpu_custom_call.1} parent=0 // pred_check_branch
    %41 = sbr.rel (0) target = $region37
  $region36: #{tpu_custom_call.1} parent=0 // pred_region
    _
  $region37: #{tpu_custom_call.1} parent=0 // pred_fallthru
    _
  // Predicated region
  $region38: #{tpu_custom_call.1} parent=0 // pred_check
    _
  $region39: #{tpu_custom_call.1} parent=0 // pred_check_branch
    %43 = sbr.rel (0) target = $region41
  $region40: #{tpu_custom_call.1} parent=0 // pred_region
    _
  $region41: #{tpu_custom_call.1} parent=0 // pred_fallthru
    _
  %s44 = sld [smem:[#allocation5]]
  %vm45 = vcmask 523264
  %46 = vst.msk [vmem:[%s12] sm:$0xff] %vm45, 0.0
  %47 = vst.msk [vmem:[%s12 + $0x8] sm:$0xff] %vm45, 0.0
  %48 = vst.msk [vmem:[%s12 + $0x10] sm:$0xff] %vm45, 0.0
  %49 = vst.msk [vmem:[%s12 + $0x18] sm:$0xff] %vm45, 0.0
  %50 = vst.msk [vmem:[%s12 + $0x20] sm:$0xff] %vm45, 0.0
  %51 = vst.msk [vmem:[%s12 + $0x28] sm:$0xff] %vm45, 0.0
  %52 = vst.msk [vmem:[%s12 + $0x30] sm:$0xff] %vm45, 0.0
  %53 = vst.msk [vmem:[%s12 + $0x38] sm:$0xff] %vm45, 0.0
  %54 = vst.msk [vmem:[%s12 + $0x40] sm:$0xff] %vm45, 0.0
  %55 = vst.msk [vmem:[%s12 + $0x48] sm:$0xff] %vm45, 0.0
  %56 = vst.msk [vmem:[%s12 + $0x50] sm:$0xff] %vm45, 0.0
  %57 = vst.msk [vmem:[%s12 + $0x58] sm:$0xff] %vm45, 0.0
  %58 = vst.msk [vmem:[%s12 + $0x60] sm:$0xff] %vm45, 0.0
  %59 = vst.msk [vmem:[%s12 + $0x68] sm:$0xff] %vm45, 0.0
  %60 = vst.msk [vmem:[%s12 + $0x70] sm:$0xff] %vm45, 0.0
  %61 = vst.msk [vmem:[%s12 + $0x78] sm:$0xff] %vm45, 0.0
  %62 = vst.msk [vmem:[%s12 + $0x80] sm:$0xff] %vm45, 0.0
  %63 = vst.msk [vmem:[%s12 + $0x88] sm:$0xff] %vm45, 0.0
  %64 = vst.msk [vmem:[%s12 + $0x90] sm:$0xff] %vm45, 0.0
  %65 = vst.msk [vmem:[%s12 + $0x98] sm:$0xff] %vm45, 0.0
  %66 = vst.msk [vmem:[%s12 + $0xa0] sm:$0xff] %vm45, 0.0
  %67 = vst.msk [vmem:[%s12 + $0xa8] sm:$0xff] %vm45, 0.0
  %68 = vst.msk [vmem:[%s12 + $0xb0] sm:$0xff] %vm45, 0.0
  %69 = vst.msk [vmem:[%s12 + $0xb8] sm:$0xff] %vm45, 0.0
  %70 = vst.msk [vmem:[%s12 + $0xc0] sm:$0xff] %vm45, 0.0
  %71 = vst.msk [vmem:[%s12 + $0xc8] sm:$0xff] %vm45, 0.0
  %72 = vst.msk [vmem:[%s12 + $0xd0] sm:$0xff] %vm45, 0.0
  %73 = vst.msk [vmem:[%s12 + $0xd8] sm:$0xff] %vm45, 0.0
  %74 = vst.msk [vmem:[%s12 + $0xe0] sm:$0xff] %vm45, 0.0
  %75 = vst.msk [vmem:[%s12 + $0xe8] sm:$0xff] %vm45, 0.0
  %76 = vst.msk [vmem:[%s12 + $0xf0] sm:$0xff] %vm45, 0.0
  %77 = vst.msk [vmem:[%s12 + $0xf8] sm:$0xff] %vm45, 0.0
  %78 = vst.msk [vmem:[%s12 + $0x100] sm:$0xff] %vm45, 0.0
  %79 = vst.msk [vmem:[%s12 + $0x108] sm:$0xff] %vm45, 0.0
  %80 = vst.msk [vmem:[%s12 + $0x110] sm:$0xff] %vm45, 0.0
  %81 = vst.msk [vmem:[%s12 + $0x118] sm:$0xff] %vm45, 0.0
  %82 = vst.msk [vmem:[%s12 + $0x120] sm:$0xff] %vm45, 0.0
  %83 = vst.msk [vmem:[%s12 + $0x128] sm:$0xff] %vm45, 0.0
  %84 = vst.msk [vmem:[%s12 + $0x130] sm:$0xff] %vm45, 0.0
  %85 = vst.msk [vmem:[%s12 + $0x138] sm:$0xff] %vm45, 0.0
  %86 = vst.msk [vmem:[%s12 + $0x140] sm:$0xff] %vm45, 0.0
  %87 = vst.msk [vmem:[%s12 + $0x148] sm:$0xff] %vm45, 0.0
  %88 = vst.msk [vmem:[%s12 + $0x150] sm:$0xff] %vm45, 0.0
  %89 = vst.msk [vmem:[%s12 + $0x158] sm:$0xff] %vm45, 0.0
  %90 = vst.msk [vmem:[%s12 + $0x160] sm:$0xff] %vm45, 0.0
  %91 = vst.msk [vmem:[%s12 + $0x168] sm:$0xff] %vm45, 0.0
  %92 = vst.msk [vmem:[%s12 + $0x170] sm:$0xff] %vm45, 0.0
  %93 = vst.msk [vmem:[%s12 + $0x178] sm:$0xff] %vm45, 0.0
  %94 = vst.msk [vmem:[%s12 + $0x180] sm:$0xff] %vm45, 0.0
  %95 = vst.msk [vmem:[%s12 + $0x188] sm:$0xff] %vm45, 0.0
  %96 = vst.msk [vmem:[%s12 + $0x190] sm:$0xff] %vm45, 0.0
  %97 = vst.msk [vmem:[%s12 + $0x198] sm:$0xff] %vm45, 0.0
  %98 = vst.msk [vmem:[%s12 + $0x1a0] sm:$0xff] %vm45, 0.0
  %99 = vst.msk [vmem:[%s12 + $0x1a8] sm:$0xff] %vm45, 0.0
  %100 = vst.msk [vmem:[%s12 + $0x1b0] sm:$0xff] %vm45, 0.0
  %101 = vst.msk [vmem:[%s12 + $0x1b8] sm:$0xff] %vm45, 0.0
  %102 = vst.msk [vmem:[%s12 + $0x1c0] sm:$0xff] %vm45, 0.0
  %103 = vst.msk [vmem:[%s12 + $0x1c8] sm:$0xff] %vm45, 0.0
  %104 = vst.msk [vmem:[%s12 + $0x1d0] sm:$0xff] %vm45, 0.0
  %105 = vst.msk [vmem:[%s12 + $0x1d8] sm:$0xff] %vm45, 0.0
  %106 = vst.msk [vmem:[%s12 + $0x1e0] sm:$0xff] %vm45, 0.0
  %107 = vst.msk [vmem:[%s12 + $0x1e8] sm:$0xff] %vm45, 0.0
  %108 = vst.msk [vmem:[%s12 + $0x1f0] sm:$0xff] %vm45, 0.0
  %109 = vst.msk [vmem:[%s12 + $0x1f8] sm:$0xff] %vm45, 0.0
  %110 = vst.msk [vmem:[%s12 + $0x200] sm:$0xff] %vm45, 0.0
  %111 = vst.msk [vmem:[%s12 + $0x208] sm:$0xff] %vm45, 0.0
  %112 = vst.msk [vmem:[%s12 + $0x210] sm:$0xff] %vm45, 0.0
  %113 = vst.msk [vmem:[%s12 + $0x218] sm:$0xff] %vm45, 0.0
  %114 = vst.msk [vmem:[%s12 + $0x220] sm:$0xff] %vm45, 0.0
  %115 = vst.msk [vmem:[%s12 + $0x228] sm:$0xff] %vm45, 0.0
  %116 = vst.msk [vmem:[%s12 + $0x230] sm:$0xff] %vm45, 0.0
  %117 = vst.msk [vmem:[%s12 + $0x238] sm:$0xff] %vm45, 0.0
  %118 = vst.msk [vmem:[%s12 + $0x240] sm:$0xff] %vm45, 0.0
  %119 = vst.msk [vmem:[%s12 + $0x248] sm:$0xff] %vm45, 0.0
  %120 = vst.msk [vmem:[%s12 + $0x250] sm:$0xff] %vm45, 0.0
  %121 = vst.msk [vmem:[%s12 + $0x258] sm:$0xff] %vm45, 0.0
  %122 = vst.msk [vmem:[%s12 + $0x260] sm:$0xff] %vm45, 0.0
  %123 = vst.msk [vmem:[%s12 + $0x268] sm:$0xff] %vm45, 0.0
  %124 = vst.msk [vmem:[%s12 + $0x270] sm:$0xff] %vm45, 0.0
  %125 = vst.msk [vmem:[%s12 + $0x278] sm:$0xff] %vm45, 0.0
  %126 = vst.msk [vmem:[%s12 + $0x280] sm:$0xff] %vm45, 0.0
  %127 = vst.msk [vmem:[%s12 + $0x288] sm:$0xff] %vm45, 0.0
  %128 = vst.msk [vmem:[%s12 + $0x290] sm:$0xff] %vm45, 0.0
  %129 = vst.msk [vmem:[%s12 + $0x298] sm:$0xff] %vm45, 0.0
  %130 = vst.msk [vmem:[%s12 + $0x2a0] sm:$0xff] %vm45, 0.0
  %131 = vst.msk [vmem:[%s12 + $0x2a8] sm:$0xff] %vm45, 0.0
  %132 = vst.msk [vmem:[%s12 + $0x2b0] sm:$0xff] %vm45, 0.0
  %133 = vst.msk [vmem:[%s12 + $0x2b8] sm:$0xff] %vm45, 0.0
  %134 = vst.msk [vmem:[%s12 + $0x2c0] sm:$0xff] %vm45, 0.0
  %135 = vst.msk [vmem:[%s12 + $0x2c8] sm:$0xff] %vm45, 0.0
  %136 = vst.msk [vmem:[%s12 + $0x2d0] sm:$0xff] %vm45, 0.0
  %137 = vst.msk [vmem:[%s12 + $0x2d8] sm:$0xff] %vm45, 0.0
  %138 = vst.msk [vmem:[%s12 + $0x2e0] sm:$0xff] %vm45, 0.0
  %139 = vst.msk [vmem:[%s12 + $0x2e8] sm:$0xff] %vm45, 0.0
  %140 = vst.msk [vmem:[%s12 + $0x2f0] sm:$0xff] %vm45, 0.0
  %141 = vst.msk [vmem:[%s12 + $0x2f8] sm:$0xff] %vm45, 0.0
  %142 = vst.msk [vmem:[%s12 + $0x300] sm:$0xff] %vm45, 0.0
  %143 = vst.msk [vmem:[%s12 + $0x308] sm:$0xff] %vm45, 0.0
  %144 = vst.msk [vmem:[%s12 + $0x310] sm:$0xff] %vm45, 0.0
  %145 = vst.msk [vmem:[%s12 + $0x318] sm:$0xff] %vm45, 0.0
  %146 = vst.msk [vmem:[%s12 + $0x320] sm:$0xff] %vm45, 0.0
  %147 = vst.msk [vmem:[%s12 + $0x328] sm:$0xff] %vm45, 0.0
  %148 = vst.msk [vmem:[%s12 + $0x330] sm:$0xff] %vm45, 0.0
  %149 = vst.msk [vmem:[%s12 + $0x338] sm:$0xff] %vm45, 0.0
  %150 = vst.msk [vmem:[%s12 + $0x340] sm:$0xff] %vm45, 0.0
  %151 = vst.msk [vmem:[%s12 + $0x348] sm:$0xff] %vm45, 0.0
  %152 = vst.msk [vmem:[%s12 + $0x350] sm:$0xff] %vm45, 0.0
  %153 = vst.msk [vmem:[%s12 + $0x358] sm:$0xff] %vm45, 0.0
  %154 = vst.msk [vmem:[%s12 + $0x360] sm:$0xff] %vm45, 0.0
  %155 = vst.msk [vmem:[%s12 + $0x368] sm:$0xff] %vm45, 0.0
  %156 = vst.msk [vmem:[%s12 + $0x370] sm:$0xff] %vm45, 0.0
  %157 = vst.msk [vmem:[%s12 + $0x378] sm:$0xff] %vm45, 0.0
  %158 = vst.msk [vmem:[%s12 + $0x380] sm:$0xff] %vm45, 0.0
  %159 = vst.msk [vmem:[%s12 + $0x388] sm:$0xff] %vm45, 0.0
  %160 = vst.msk [vmem:[%s12 + $0x390] sm:$0xff] %vm45, 0.0
  %161 = vst.msk [vmem:[%s12 + $0x398] sm:$0xff] %vm45, 0.0
  %162 = vst.msk [vmem:[%s12 + $0x3a0] sm:$0xff] %vm45, 0.0
  %163 = vst.msk [vmem:[%s12 + $0x3a8] sm:$0xff] %vm45, 0.0
  %164 = vst.msk [vmem:[%s12 + $0x3b0] sm:$0xff] %vm45, 0.0
  %165 = vst.msk [vmem:[%s12 + $0x3b8] sm:$0xff] %vm45, 0.0
  %166 = vst.msk [vmem:[%s12 + $0x3c0] sm:$0xff] %vm45, 0.0
  %167 = vst.msk [vmem:[%s12 + $0x3c8] sm:$0xff] %vm45, 0.0
  %168 = vst.msk [vmem:[%s12 + $0x3d0] sm:$0xff] %vm45, 0.0
  %169 = vst.msk [vmem:[%s12 + $0x3d8] sm:$0xff] %vm45, 0.0
  %170 = vst.msk [vmem:[%s12 + $0x3e0] sm:$0xff] %vm45, 0.0
  %171 = vst.msk [vmem:[%s12 + $0x3e8] sm:$0xff] %vm45, 0.0
  %172 = vst.msk [vmem:[%s12 + $0x3f0] sm:$0xff] %vm45, 0.0
  %173 = vst.msk [vmem:[%s12 + $0x3f8] sm:$0xff] %vm45, 0.0
  %v174 = vlaneseq
  %v175 = vand.u32 %v174, 127
  %v176 = vld [vmem:[%s4] sm:$0xff]
  %v177 = vld [vmem:[%s4 + $0x8] sm:$0xff]
  %v178 = vld [vmem:[%s4 + $0x10] sm:$0xff]
  %v179 = vld [vmem:[%s4 + $0x18] sm:$0xff]
  %v180 = vld [vmem:[%s4 + $0x20] sm:$0xff]
  %v181 = vld [vmem:[%s4 + $0x28] sm:$0xff]
  %v182 = vld [vmem:[%s4 + $0x30] sm:$0xff]
  %v183 = vld [vmem:[%s4 + $0x38] sm:$0xff]
  %v184 = vld [vmem:[%s4 + $0x40] sm:$0xff]
  %v185 = vld [vmem:[%s4 + $0x48] sm:$0xff]
  %v186 = vld [vmem:[%s4 + $0x50] sm:$0xff]
  %v187 = vld [vmem:[%s4 + $0x58] sm:$0xff]
  %v188 = vld [vmem:[%s4 + $0x60] sm:$0xff]
  %v189 = vld [vmem:[%s4 + $0x68] sm:$0xff]
  %v190 = vld [vmem:[%s4 + $0x70] sm:$0xff]
  %v191 = vld [vmem:[%s4 + $0x78] sm:$0xff]
  %192 = vset.pattern.permute.xlu0 0
  %193 = vperm.xlu0 %192, %v176
  %v194 = vpop.permute.xlu0 %193
  %195 = vset.pattern.permute.xlu0 0
  %196 = vperm.xlu0 %195, %v177
  %v197 = vpop.permute.xlu0 %196
  %198 = vset.pattern.permute.xlu0 0
  %199 = vperm.xlu0 %198, %v178
  %v200 = vpop.permute.xlu0 %199
  %201 = vset.pattern.permute.xlu0 0
  %202 = vperm.xlu0 %201, %v179
  %v203 = vpop.permute.xlu0 %202
  %204 = vset.pattern.permute.xlu0 0
  %205 = vperm.xlu0 %204, %v180
  %v206 = vpop.permute.xlu0 %205
  %207 = vset.pattern.permute.xlu0 0
  %208 = vperm.xlu0 %207, %v181
  %v209 = vpop.permute.xlu0 %208
  %210 = vset.pattern.permute.xlu0 0
  %211 = vperm.xlu0 %210, %v182
  %v212 = vpop.permute.xlu0 %211
  %213 = vset.pattern.permute.xlu0 0
  %214 = vperm.xlu0 %213, %v183
  %v215 = vpop.permute.xlu0 %214
  %216 = vset.pattern.permute.xlu0 0
  %217 = vperm.xlu0 %216, %v184
  %v218 = vpop.permute.xlu0 %217
  %219 = vset.pattern.permute.xlu0 0
  %220 = vperm.xlu0 %219, %v185
  %v221 = vpop.permute.xlu0 %220
  %222 = vset.pattern.permute.xlu0 0
  %223 = vperm.xlu0 %222, %v186
  %v224 = vpop.permute.xlu0 %223
  %225 = vset.pattern.permute.xlu0 0
  %226 = vperm.xlu0 %225, %v187
  %v227 = vpop.permute.xlu0 %226
  %228 = vset.pattern.permute.xlu0 0
  %229 = vperm.xlu0 %228, %v188
  %v230 = vpop.permute.xlu0 %229
  %231 = vset.pattern.permute.xlu0 0
  %232 = vperm.xlu0 %231, %v189
  %v233 = vpop.permute.xlu0 %232
  %234 = vset.pattern.permute.xlu0 0
  %235 = vperm.xlu0 %234, %v190
  %v236 = vpop.permute.xlu0 %235
  %237 = vset.pattern.permute.xlu0 0
  %238 = vperm.xlu0 %237, %v191
  %v239 = vpop.permute.xlu0 %238
  %vm240 = vcmp.eq.s32.totalorder %v175, %v194
  %vm241 = vcmp.eq.s32.totalorder %v175, %v197
  %vm242 = vcmp.eq.s32.totalorder %v175, %v200
  %vm243 = vcmp.eq.s32.totalorder %v175, %v203
  %vm244 = vcmp.eq.s32.totalorder %v175, %v206
  %vm245 = vcmp.eq.s32.totalorder %v175, %v209
  %vm246 = vcmp.eq.s32.totalorder %v175, %v212
  %vm247 = vcmp.eq.s32.totalorder %v175, %v215
  %vm248 = vcmp.eq.s32.totalorder %v175, %v218
  %vm249 = vcmp.eq.s32.totalorder %v175, %v221
  %vm250 = vcmp.eq.s32.totalorder %v175, %v224
  %vm251 = vcmp.eq.s32.totalorder %v175, %v227
  %vm252 = vcmp.eq.s32.totalorder %v175, %v230
  %vm253 = vcmp.eq.s32.totalorder %v175, %v233
  %vm254 = vcmp.eq.s32.totalorder %v175, %v236
  %vm255 = vcmp.eq.s32.totalorder %v175, %v239
  %v256 = vsel %vm240, 1, 0
  %v257 = vsel %vm241, 1, 0
  %v258 = vsel %vm242, 1, 0
  %v259 = vsel %vm243, 1, 0
  %v260 = vsel %vm244, 1, 0
  %v261 = vsel %vm245, 1, 0
  %v262 = vsel %vm246, 1, 0
  %v263 = vsel %vm247, 1, 0
  %v264 = vsel %vm248, 1, 0
  %v265 = vsel %vm249, 1, 0
  %v266 = vsel %vm250, 1, 0
  %v267 = vsel %vm251, 1, 0
  %v268 = vsel %vm252, 1, 0
  %v269 = vsel %vm253, 1, 0
  %v270 = vsel %vm254, 1, 0
  %v271 = vsel %vm255, 1, 0
  %v272 = vcvt.s32.f32 %v256
  %v273 = vcvt.s32.f32 %v257
  %v274 = vcvt.s32.f32 %v258
  %v275 = vcvt.s32.f32 %v259
  %v276 = vcvt.s32.f32 %v260
  %v277 = vcvt.s32.f32 %v261
  %v278 = vcvt.s32.f32 %v262
  %v279 = vcvt.s32.f32 %v263
  %v280 = vcvt.s32.f32 %v264
  %v281 = vcvt.s32.f32 %v265
  %v282 = vcvt.s32.f32 %v266
  %v283 = vcvt.s32.f32 %v267
  %v284 = vcvt.s32.f32 %v268
  %v285 = vcvt.s32.f32 %v269
  %v286 = vcvt.s32.f32 %v270
  %v287 = vcvt.s32.f32 %v271
  %v288 = vld [vmem:[%s5] sm:$0xff]
  %v289 = vld [vmem:[%s5 + $0x8] sm:$0xff]
  %v290 = vld [vmem:[%s5 + $0x10] sm:$0xff]
  %v291 = vld [vmem:[%s5 + $0x18] sm:$0xff]
  %v292 = vld [vmem:[%s5 + $0x20] sm:$0xff]
  %v293 = vld [vmem:[%s5 + $0x28] sm:$0xff]
  %v294 = vld [vmem:[%s5 + $0x30] sm:$0xff]
  %v295 = vld [vmem:[%s5 + $0x38] sm:$0xff]
  %v296 = vld [vmem:[%s5 + $0x40] sm:$0xff]
  %v297 = vld [vmem:[%s5 + $0x48] sm:$0xff]
  %v298 = vld [vmem:[%s5 + $0x50] sm:$0xff]
  %v299 = vld [vmem:[%s5 + $0x58] sm:$0xff]
  %v300 = vld [vmem:[%s5 + $0x60] sm:$0xff]
  %v301 = vld [vmem:[%s5 + $0x68] sm:$0xff]
  %v302 = vld [vmem:[%s5 + $0x70] sm:$0xff]
  %v303 = vld [vmem:[%s5 + $0x78] sm:$0xff]
  %304 = vmatprep.subr.mxu0 0.0
  %305 = vmatpush1.msra.mxu0 %v288
  %306 = vmatprep.subr.mxu0 0.0
  %307 = vmatpush1.msra.mxu0 %v289
  %308 = vmatprep.subr.mxu0 0.0
  %309 = vmatpush1.msra.mxu0 %v290
  %310 = vmatprep.subr.mxu0 0.0
  %311 = vmatpush1.msra.mxu0 %v291
  %312 = vmatprep.subr.mxu0 0.0
  %313 = vmatpush1.msra.mxu0 %v292
  %314 = vmatprep.subr.mxu0 0.0
  %315 = vmatpush1.msra.mxu0 %v293
  %316 = vmatprep.subr.mxu0 0.0
  %317 = vmatpush1.msra.mxu0 %v294
  %318 = vmatprep.subr.mxu0 0.0
  %319 = vmatpush1.msra.mxu0 %v295
  %320 = vmatprep.subr.mxu0 0.0
  %321 = vmatpush1.msra.mxu0 %v296
  %322 = vmatprep.subr.mxu0 0.0
  %323 = vmatpush1.msra.mxu0 %v297
  %324 = vmatprep.subr.mxu0 0.0
  %325 = vmatpush1.msra.mxu0 %v298
  %326 = vmatprep.subr.mxu0 0.0
  %327 = vmatpush1.msra.mxu0 %v299
  %328 = vmatprep.subr.mxu0 0.0
  %329 = vmatpush1.msra.mxu0 %v300
  %330 = vmatprep.subr.mxu0 0.0
  %331 = vmatpush1.msra.mxu0 %v301
  %332 = vmatprep.subr.mxu0 0.0
  %333 = vmatpush1.msra.mxu0 %v302
  %334 = vmatprep.subr.mxu0 0.0
  %335 = vmatpush1.msra.mxu0 %v303
  %336 = vmatprep.subr.mxu0 0.0
  %337 = vmatpush1.msra.mxu0 0.0
  %338 = vmatprep.subr.mxu0 0.0
  %339 = vmatpush1.msra.mxu0 0.0
  %340 = vmatprep.subr.mxu0 0.0
  %341 = vmatpush1.msra.mxu0 0.0
  %342 = vmatprep.subr.mxu0 0.0
  %343 = vmatpush1.msra.mxu0 0.0
  %344 = vmatprep.subr.mxu0 0.0
  %345 = vmatpush1.msra.mxu0 0.0
  %346 = vmatprep.subr.mxu0 0.0
  %347 = vmatpush1.msra.mxu0 0.0
  %348 = vmatprep.subr.mxu0 0.0
  %349 = vmatpush1.msra.mxu0 0.0
  %350 = vmatprep.subr.mxu0 0.0
  %351 = vmatpush1.msra.mxu0 0.0
  %352 = vmatprep.subr.mxu0 0.0
  %353 = vmatpush1.msra.mxu0 0.0
  %354 = vmatprep.subr.mxu0 0.0
  %355 = vmatpush1.msra.mxu0 0.0
  %356 = vmatprep.subr.mxu0 0.0
  %357 = vmatpush1.msra.mxu0 0.0
  %358 = vmatprep.subr.mxu0 0.0
  %359 = vmatpush1.msra.mxu0 0.0
  %360 = vmatprep.subr.mxu0 0.0
  %361 = vmatpush1.msra.mxu0 0.0
  %362 = vmatprep.subr.mxu0 0.0
  %363 = vmatpush1.msra.mxu0 0.0
  %364 = vmatprep.subr.mxu0 0.0
  %365 = vmatpush1.msra.mxu0 0.0
  %366 = vmatprep.subr.mxu0 0.0
  %367 = vmatpush1.msra.mxu0 0.0
  %368 = vmatprep.mubr.f32.mxu0 0.0
  %369 = vmatmul.mubr.f32.gmra.mrb[0].mxu0 %v272
  %v370 = vpop.f32.mrb[0].mxu0
  %v371 = vadd.f32 0.0, %v370
  %v372 = vpop.f32.mrb[0].mxu0
  %373 = vmatprep.mubr.f32.mxu0 0.0
  %374 = vmatmul.mubr.f32.gmra.mrb[0].mxu0 %v273
  %v375 = vpop.f32.mrb[0].mxu0
  %v376 = vadd.f32 0.0, %v375
  %v377 = vpop.f32.mrb[0].mxu0
  %378 = vmatprep.mubr.f32.mxu0 0.0
  %379 = vmatmul.mubr.f32.gmra.mrb[0].mxu0 %v274
  %v380 = vpop.f32.mrb[0].mxu0
  %v381 = vadd.f32 0.0, %v380
  %v382 = vpop.f32.mrb[0].mxu0
  %383 = vmatprep.mubr.f32.mxu0 0.0
  %384 = vmatmul.mubr.f32.gmra.mrb[0].mxu0 %v275
  %v385 = vpop.f32.mrb[0].mxu0
  %v386 = vadd.f32 0.0, %v385
  %v387 = vpop.f32.mrb[0].mxu0
  %388 = vmatprep.mubr.f32.mxu0 0.0
  %389 = vmatmul.mubr.f32.gmra.mrb[0].mxu0 %v276
  %v390 = vpop.f32.mrb[0].mxu0
  %v391 = vadd.f32 0.0, %v390
  %v392 = vpop.f32.mrb[0].mxu0
  %393 = vmatprep.mubr.f32.mxu0 0.0
  %394 = vmatmul.mubr.f32.gmra.mrb[0].mxu0 %v277
  %v395 = vpop.f32.mrb[0].mxu0
  %v396 = vadd.f32 0.0, %v395
  %v397 = vpop.f32.mrb[0].mxu0
  %398 = vmatprep.mubr.f32.mxu0 0.0
  %399 = vmatmul.mubr.f32.gmra.mrb[0].mxu0 %v278
  %v400 = vpop.f32.mrb[0].mxu0
  %v401 = vadd.f32 0.0, %v400
  %v402 = vpop.f32.mrb[0].mxu0
  %403 = vmatprep.mubr.f32.mxu0 0.0
  %404 = vmatmul.mubr.f32.gmra.mrb[0].mxu0 %v279
  %v405 = vpop.f32.mrb[0].mxu0
  %v406 = vadd.f32 0.0, %v405
  %v407 = vpop.f32.mrb[0].mxu0
  %408 = vmatprep.mubr.f32.mxu0 0.0
  %409 = vmatmul.mubr.f32.gmra.mrb[0].mxu0 %v280
  %v410 = vpop.f32.mrb[0].mxu0
  %v411 = vadd.f32 0.0, %v410
  %v412 = vpop.f32.mrb[0].mxu0
  %413 = vmatprep.mubr.f32.mxu0 0.0
  %414 = vmatmul.mubr.f32.gmra.mrb[0].mxu0 %v281
  %v415 = vpop.f32.mrb[0].mxu0
  %v416 = vadd.f32 0.0, %v415
  %v417 = vpop.f32.mrb[0].mxu0
  %418 = vmatprep.mubr.f32.mxu0 0.0
  %419 = vmatmul.mubr.f32.gmra.mrb[0].mxu0 %v282
  %v420 = vpop.f32.mrb[0].mxu0
  %v421 = vadd.f32 0.0, %v420
  %v422 = vpop.f32.mrb[0].mxu0
  %423 = vmatprep.mubr.f32.mxu0 0.0
  %424 = vmatmul.mubr.f32.gmra.mrb[0].mxu0 %v283
  %v425 = vpop.f32.mrb[0].mxu0
  %v426 = vadd.f32 0.0, %v425
  %v427 = vpop.f32.mrb[0].mxu0
  %428 = vmatprep.mubr.f32.mxu0 0.0
  %429 = vmatmul.mubr.f32.gmra.mrb[0].mxu0 %v284
  %v430 = vpop.f32.mrb[0].mxu0
  %v431 = vadd.f32 0.0, %v430
  %v432 = vpop.f32.mrb[0].mxu0
  %433 = vmatprep.mubr.f32.mxu0 0.0
  %434 = vmatmul.mubr.f32.gmra.mrb[0].mxu0 %v285
  %v435 = vpop.f32.mrb[0].mxu0
  %v436 = vadd.f32 0.0, %v435
  %v437 = vpop.f32.mrb[0].mxu0
  %438 = vmatprep.mubr.f32.mxu0 0.0
  %439 = vmatmul.mubr.f32.gmra.mrb[0].mxu0 %v286
  %v440 = vpop.f32.mrb[0].mxu0
  %v441 = vadd.f32 0.0, %v440
  %v442 = vpop.f32.mrb[0].mxu0
  %443 = vmatprep.mubr.f32.mxu0 0.0
  %444 = vmatmul.mubr.f32.gmra.mrb[0].mxu0 %v287
  %v445 = vpop.f32.mrb[0].mxu0
  %v446 = vadd.f32 0.0, %v445
  %v447 = vpop.f32.mrb[0].mxu0
  %448 = vdwg.mxu0
  %v449 = vld [vmem:[%s2] sm:$0xff]
  %v450 = vld [vmem:[%s2 + $0x8] sm:$0xff]
  %v451 = vld [vmem:[%s2 + $0x10] sm:$0xff]
  %v452 = vld [vmem:[%s2 + $0x18] sm:$0xff]
  %v453 = vld [vmem:[%s2 + $0x20] sm:$0xff]
  %v454 = vld [vmem:[%s2 + $0x28] sm:$0xff]
  %v455 = vld [vmem:[%s2 + $0x30] sm:$0xff]
  %v456 = vld [vmem:[%s2 + $0x38] sm:$0xff]
  %v457 = vld [vmem:[%s2 + $0x40] sm:$0xff]
  %v458 = vld [vmem:[%s2 + $0x48] sm:$0xff]
  %v459 = vld [vmem:[%s2 + $0x50] sm:$0xff]
  %v460 = vld [vmem:[%s2 + $0x58] sm:$0xff]
  %v461 = vld [vmem:[%s2 + $0x60] sm:$0xff]
  %v462 = vld [vmem:[%s2 + $0x68] sm:$0xff]
  %v463 = vld [vmem:[%s2 + $0x70] sm:$0xff]
  %v464 = vld [vmem:[%s2 + $0x78] sm:$0xff]
  %v465 = vld [vmem:[%s6] sm:$0xff]
  %v466 = vld [vmem:[%s6 + $0x8] sm:$0xff]
  %v467 = vld [vmem:[%s6 + $0x10] sm:$0xff]
  %v468 = vld [vmem:[%s6 + $0x18] sm:$0xff]
  %v469 = vld [vmem:[%s3] sm:$0xff]
  %v470 = vld [vmem:[%s3 + $0x8] sm:$0xff]
  %v471 = vld [vmem:[%s3 + $0x10] sm:$0xff]
  %v472 = vld [vmem:[%s3 + $0x18] sm:$0xff]
  %v473 = vld [vmem:[%s3 + $0x20] sm:$0xff]
  %v474 = vld [vmem:[%s3 + $0x28] sm:$0xff]
  %v475 = vld [vmem:[%s3 + $0x30] sm:$0xff]
  %v476 = vld [vmem:[%s3 + $0x38] sm:$0xff]
  %v477 = vld [vmem:[%s3 + $0x40] sm:$0xff]
  %v478 = vld [vmem:[%s3 + $0x48] sm:$0xff]
  %v479 = vld [vmem:[%s3 + $0x50] sm:$0xff]
  %v480 = vld [vmem:[%s3 + $0x58] sm:$0xff]
  %v481 = vld [vmem:[%s3 + $0x60] sm:$0xff]
  %v482 = vld [vmem:[%s3 + $0x68] sm:$0xff]
  %v483 = vld [vmem:[%s3 + $0x70] sm:$0xff]
  %v484 = vld [vmem:[%s3 + $0x78] sm:$0xff]
  %v485 = vld [vmem:[%s7] sm:$0xff]
  %v486 = vld [vmem:[%s7 + $0x8] sm:$0xff]
  %v487 = vld [vmem:[%s7 + $0x10] sm:$0xff]
  %v488 = vld [vmem:[%s7 + $0x18] sm:$0xff]
  %vm489 = vcmask 261120
  %v491 = vsel %vm489, %v469, 0
  %v494 = vsel %vm489, %v470, 0
  %v497 = vsel %vm489, %v471, 0
  %v500 = vsel %vm489, %v472, 0
  %v503 = vsel %vm489, %v473, 0
  %v506 = vsel %vm489, %v474, 0
  %v509 = vsel %vm489, %v475, 0
  %v512 = vsel %vm489, %v476, 0
  %v515 = vsel %vm489, %v477, 0
  %v518 = vsel %vm489, %v478, 0
  %v521 = vsel %vm489, %v479, 0
  %v524 = vsel %vm489, %v480, 0
  %v527 = vsel %vm489, %v481, 0
  %v530 = vsel %vm489, %v482, 0
  %v533 = vsel %vm489, %v483, 0
  %v536 = vsel %vm489, %v484, 0
  %538 = vmatprep.subr.mxu0 0.0
  %539 = vmatpush1.msra.mxu0 %v485
  %540 = vmatprep.subr.mxu0 0.0
  %541 = vmatpush1.msra.mxu0 %v486
  %542 = vmatprep.subr.mxu0 0.0
  %543 = vmatpush1.msra.mxu0 %v487
  %544 = vmatprep.subr.mxu0 0.0
  %545 = vmatpush1.msra.mxu0 %v488
  %546 = vmatprep.subr.mxu0 0.0
  %547 = vmatpush1.msra.mxu0 0.0
  %548 = vmatprep.subr.mxu0 0.0
  %549 = vmatpush1.msra.mxu0 0.0
  %550 = vmatprep.subr.mxu0 0.0
  %551 = vmatpush1.msra.mxu0 0.0
  %552 = vmatprep.subr.mxu0 0.0
  %553 = vmatpush1.msra.mxu0 0.0
  %554 = vmatprep.subr.mxu0 0.0
  %555 = vmatpush1.msra.mxu0 0.0
  %556 = vmatprep.subr.mxu0 0.0
  %557 = vmatpush1.msra.mxu0 0.0
  %558 = vmatprep.subr.mxu0 0.0
  %559 = vmatpush1.msra.mxu0 0.0
  %560 = vmatprep.subr.mxu0 0.0
  %561 = vmatpush1.msra.mxu0 0.0
  %562 = vmatprep.subr.mxu0 0.0
  %563 = vmatpush1.msra.mxu0 0.0
  %564 = vmatprep.subr.mxu0 0.0
  %565 = vmatpush1.msra.mxu0 0.0
  %566 = vmatprep.subr.mxu0 0.0
  %567 = vmatpush1.msra.mxu0 0.0
  %568 = vmatprep.subr.mxu0 0.0
  %569 = vmatpush1.msra.mxu0 0.0
  %570 = vmatprep.subr.mxu0 0.0
  %571 = vmatpush1.msra.mxu0 0.0
  %572 = vmatprep.subr.mxu0 0.0
  %573 = vmatpush1.msra.mxu0 0.0
  %574 = vmatprep.subr.mxu0 0.0
  %575 = vmatpush1.msra.mxu0 0.0
  %576 = vmatprep.subr.mxu0 0.0
  %577 = vmatpush1.msra.mxu0 0.0
  %578 = vmatprep.subr.mxu0 0.0
  %579 = vmatpush1.msra.mxu0 0.0
  %580 = vmatprep.subr.mxu0 0.0
  %581 = vmatpush1.msra.mxu0 0.0
  %582 = vmatprep.subr.mxu0 0.0
  %583 = vmatpush1.msra.mxu0 0.0
  %584 = vmatprep.subr.mxu0 0.0
  %585 = vmatpush1.msra.mxu0 0.0
  %586 = vmatprep.subr.mxu0 0.0
  %587 = vmatpush1.msra.mxu0 0.0
  %588 = vmatprep.subr.mxu0 0.0
  %589 = vmatpush1.msra.mxu0 0.0
  %590 = vmatprep.subr.mxu0 0.0
  %591 = vmatpush1.msra.mxu0 0.0
  %592 = vmatprep.subr.mxu0 0.0
  %593 = vmatpush1.msra.mxu0 0.0
  %594 = vmatprep.subr.mxu0 0.0
  %595 = vmatpush1.msra.mxu0 0.0
  %596 = vmatprep.subr.mxu0 0.0
  %597 = vmatpush1.msra.mxu0 0.0
  %598 = vmatprep.subr.mxu0 0.0
  %599 = vmatpush1.msra.mxu0 0.0
  %600 = vmatprep.subr.mxu0 0.0
  %601 = vmatpush1.msra.mxu0 0.0
  %602 = vmatprep.mubr.f32.mxu0 0.0
  %603 = vmatmul.mubr.f32.gmra.mrb[0].mxu0 %v491
  %v604 = vpop.f32.mrb[0].mxu0
  %v605 = vadd.f32 0.0, %v604
  %v606 = vpop.f32.mrb[0].mxu0
  %607 = vmatprep.mubr.f32.mxu0 0.0
  %608 = vmatmul.mubr.f32.gmra.mrb[0].mxu0 %v494
  %v609 = vpop.f32.mrb[0].mxu0
  %v610 = vadd.f32 0.0, %v609
  %v611 = vpop.f32.mrb[0].mxu0
  %612 = vmatprep.mubr.f32.mxu0 0.0
  %613 = vmatmul.mubr.f32.gmra.mrb[0].mxu0 %v497
  %v614 = vpop.f32.mrb[0].mxu0
  %v615 = vadd.f32 0.0, %v614
  %v616 = vpop.f32.mrb[0].mxu0
  %617 = vmatprep.mubr.f32.mxu0 0.0
  %618 = vmatmul.mubr.f32.gmra.mrb[0].mxu0 %v500
  %v619 = vpop.f32.mrb[0].mxu0
  %v620 = vadd.f32 0.0, %v619
  %v621 = vpop.f32.mrb[0].mxu0
  %622 = vmatprep.mubr.f32.mxu0 0.0
  %623 = vmatmul.mubr.f32.gmra.mrb[0].mxu0 %v503
  %v624 = vpop.f32.mrb[0].mxu0
  %v625 = vadd.f32 0.0, %v624
  %v626 = vpop.f32.mrb[0].mxu0
  %627 = vmatprep.mubr.f32.mxu0 0.0
  %628 = vmatmul.mubr.f32.gmra.mrb[0].mxu0 %v506
  %v629 = vpop.f32.mrb[0].mxu0
  %v630 = vadd.f32 0.0, %v629
  %v631 = vpop.f32.mrb[0].mxu0
  %632 = vmatprep.mubr.f32.mxu0 0.0
  %633 = vmatmul.mubr.f32.gmra.mrb[0].mxu0 %v509
  %v634 = vpop.f32.mrb[0].mxu0
  %v635 = vadd.f32 0.0, %v634
  %v636 = vpop.f32.mrb[0].mxu0
  %637 = vmatprep.mubr.f32.mxu0 0.0
  %638 = vmatmul.mubr.f32.gmra.mrb[0].mxu0 %v512
  %v639 = vpop.f32.mrb[0].mxu0
  %v640 = vadd.f32 0.0, %v639
  %v641 = vpop.f32.mrb[0].mxu0
  %642 = vmatprep.mubr.f32.mxu0 0.0
  %643 = vmatmul.mubr.f32.gmra.mrb[0].mxu0 %v515
  %v644 = vpop.f32.mrb[0].mxu0
  %v645 = vadd.f32 0.0, %v644
  %v646 = vpop.f32.mrb[0].mxu0
  %647 = vmatprep.mubr.f32.mxu0 0.0
  %648 = vmatmul.mubr.f32.gmra.mrb[0].mxu0 %v518
  %v649 = vpop.f32.mrb[0].mxu0
  %v650 = vadd.f32 0.0, %v649
  %v651 = vpop.f32.mrb[0].mxu0
  %652 = vmatprep.mubr.f32.mxu0 0.0
  %653 = vmatmul.mubr.f32.gmra.mrb[0].mxu0 %v521
  %v654 = vpop.f32.mrb[0].mxu0
  %v655 = vadd.f32 0.0, %v654
  %v656 = vpop.f32.mrb[0].mxu0
  %657 = vmatprep.mubr.f32.mxu0 0.0
  %658 = vmatmul.mubr.f32.gmra.mrb[0].mxu0 %v524
  %v659 = vpop.f32.mrb[0].mxu0
  %v660 = vadd.f32 0.0, %v659
  %v661 = vpop.f32.mrb[0].mxu0
  %662 = vmatprep.mubr.f32.mxu0 0.0
  %663 = vmatmul.mubr.f32.gmra.mrb[0].mxu0 %v527
  %v664 = vpop.f32.mrb[0].mxu0
  %v665 = vadd.f32 0.0, %v664
  %v666 = vpop.f32.mrb[0].mxu0
  %667 = vmatprep.mubr.f32.mxu0 0.0
  %668 = vmatmul.mubr.f32.gmra.mrb[0].mxu0 %v530
  %v669 = vpop.f32.mrb[0].mxu0
  %v670 = vadd.f32 0.0, %v669
  %v671 = vpop.f32.mrb[0].mxu0
  %672 = vmatprep.mubr.f32.mxu0 0.0
  %673 = vmatmul.mubr.f32.gmra.mrb[0].mxu0 %v533
  %v674 = vpop.f32.mrb[0].mxu0
  %v675 = vadd.f32 0.0, %v674
  %v676 = vpop.f32.mrb[0].mxu0
  %677 = vmatprep.mubr.f32.mxu0 0.0
  %678 = vmatmul.mubr.f32.gmra.mrb[0].mxu0 %v536
  %v679 = vpop.f32.mrb[0].mxu0
  %v680 = vadd.f32 0.0, %v679
  %v681 = vpop.f32.mrb[0].mxu0
  %682 = vdwg.mxu0
  %v684 = vsel %vm489, %v449, 0
  %v687 = vsel %vm489, %v450, 0
  %v690 = vsel %vm489, %v451, 0
  %v693 = vsel %vm489, %v452, 0
  %v696 = vsel %vm489, %v453, 0
  %v699 = vsel %vm489, %v454, 0
  %v702 = vsel %vm489, %v455, 0
  %v705 = vsel %vm489, %v456, 0
  %v708 = vsel %vm489, %v457, 0
  %v711 = vsel %vm489, %v458, 0
  %v714 = vsel %vm489, %v459, 0
  %v717 = vsel %vm489, %v460, 0
  %v720 = vsel %vm489, %v461, 0
  %v723 = vsel %vm489, %v462, 0
  %v726 = vsel %vm489, %v463, 0
  %v729 = vsel %vm489, %v464, 0
  %731 = vmatprep.subr.mxu0 0.0
  %732 = vmatpush1.msra.mxu0 %v465
  %733 = vmatprep.subr.mxu0 0.0
  %734 = vmatpush1.msra.mxu0 %v466
  %735 = vmatprep.subr.mxu0 0.0
  %736 = vmatpush1.msra.mxu0 %v467
  %737 = vmatprep.subr.mxu0 0.0
  %738 = vmatpush1.msra.mxu0 %v468
  %739 = vmatprep.subr.mxu0 0.0
  %740 = vmatpush1.msra.mxu0 0.0
  %741 = vmatprep.subr.mxu0 0.0
  %742 = vmatpush1.msra.mxu0 0.0
  %743 = vmatprep.subr.mxu0 0.0
  %744 = vmatpush1.msra.mxu0 0.0
  %745 = vmatprep.subr.mxu0 0.0
  %746 = vmatpush1.msra.mxu0 0.0
  %747 = vmatprep.subr.mxu0 0.0
  %748 = vmatpush1.msra.mxu0 0.0
  %749 = vmatprep.subr.mxu0 0.0
  %750 = vmatpush1.msra.mxu0 0.0
  %751 = vmatprep.subr.mxu0 0.0
  %752 = vmatpush1.msra.mxu0 0.0
  %753 = vmatprep.subr.mxu0 0.0
  %754 = vmatpush1.msra.mxu0 0.0
  %755 = vmatprep.subr.mxu0 0.0
  %756 = vmatpush1.msra.mxu0 0.0
  %757 = vmatprep.subr.mxu0 0.0
  %758 = vmatpush1.msra.mxu0 0.0
  %759 = vmatprep.subr.mxu0 0.0
  %760 = vmatpush1.msra.mxu0 0.0
  %761 = vmatprep.subr.mxu0 0.0
  %762 = vmatpush1.msra.mxu0 0.0
  %763 = vmatprep.subr.mxu0 0.0
  %764 = vmatpush1.msra.mxu0 0.0
  %765 = vmatprep.subr.mxu0 0.0
  %766 = vmatpush1.msra.mxu0 0.0
  %767 = vmatprep.subr.mxu0 0.0
  %768 = vmatpush1.msra.mxu0 0.0
  %769 = vmatprep.subr.mxu0 0.0
  %770 = vmatpush1.msra.mxu0 0.0
  %771 = vmatprep.subr.mxu0 0.0
  %772 = vmatpush1.msra.mxu0 0.0
  %773 = vmatprep.subr.mxu0 0.0
  %774 = vmatpush1.msra.mxu0 0.0
  %775 = vmatprep.subr.mxu0 0.0
  %776 = vmatpush1.msra.mxu0 0.0
  %777 = vmatprep.subr.mxu0 0.0
  %778 = vmatpush1.msra.mxu0 0.0
  %779 = vmatprep.subr.mxu0 0.0
  %780 = vmatpush1.msra.mxu0 0.0
  %781 = vmatprep.subr.mxu0 0.0
  %782 = vmatpush1.msra.mxu0 0.0
  %783 = vmatprep.subr.mxu0 0.0
  %784 = vmatpush1.msra.mxu0 0.0
  %785 = vmatprep.subr.mxu0 0.0
  %786 = vmatpush1.msra.mxu0 0.0
  %787 = vmatprep.subr.mxu0 0.0
  %788 = vmatpush1.msra.mxu0 0.0
  %789 = vmatprep.subr.mxu0 0.0
  %790 = vmatpush1.msra.mxu0 0.0
  %791 = vmatprep.subr.mxu0 0.0
  %792 = vmatpush1.msra.mxu0 0.0
  %793 = vmatprep.subr.mxu0 0.0
  %794 = vmatpush1.msra.mxu0 0.0
  %795 = vmatprep.mubr.f32.mxu0 0.0
  %796 = vmatmul.mubr.f32.gmra.mrb[0].mxu0 %v684
  %v797 = vpop.f32.mrb[0].mxu0
  %v798 = vadd.f32 %v605, %v797
  %v799 = vpop.f32.mrb[0].mxu0
  %800 = vmatprep.mubr.f32.mxu0 0.0
  %801 = vmatmul.mubr.f32.gmra.mrb[0].mxu0 %v687
  %v802 = vpop.f32.mrb[0].mxu0
  %v803 = vadd.f32 %v610, %v802
  %v804 = vpop.f32.mrb[0].mxu0
  %805 = vmatprep.mubr.f32.mxu0 0.0
  %806 = vmatmul.mubr.f32.gmra.mrb[0].mxu0 %v690
  %v807 = vpop.f32.mrb[0].mxu0
  %v808 = vadd.f32 %v615, %v807
  %v809 = vpop.f32.mrb[0].mxu0
  %810 = vmatprep.mubr.f32.mxu0 0.0
  %811 = vmatmul.mubr.f32.gmra.mrb[0].mxu0 %v693
  %v812 = vpop.f32.mrb[0].mxu0
  %v813 = vadd.f32 %v620, %v812
  %v814 = vpop.f32.mrb[0].mxu0
  %815 = vmatprep.mubr.f32.mxu0 0.0
  %816 = vmatmul.mubr.f32.gmra.mrb[0].mxu0 %v696
  %v817 = vpop.f32.mrb[0].mxu0
  %v818 = vadd.f32 %v625, %v817
  %v819 = vpop.f32.mrb[0].mxu0
  %820 = vmatprep.mubr.f32.mxu0 0.0
  %821 = vmatmul.mubr.f32.gmra.mrb[0].mxu0 %v699
  %v822 = vpop.f32.mrb[0].mxu0
  %v823 = vadd.f32 %v630, %v822
  %v824 = vpop.f32.mrb[0].mxu0
  %825 = vmatprep.mubr.f32.mxu0 0.0
  %826 = vmatmul.mubr.f32.gmra.mrb[0].mxu0 %v702
  %v827 = vpop.f32.mrb[0].mxu0
  %v828 = vadd.f32 %v635, %v827
  %v829 = vpop.f32.mrb[0].mxu0
  %830 = vmatprep.mubr.f32.mxu0 0.0
  %831 = vmatmul.mubr.f32.gmra.mrb[0].mxu0 %v705
  %v832 = vpop.f32.mrb[0].mxu0
  %v833 = vadd.f32 %v640, %v832
  %v834 = vpop.f32.mrb[0].mxu0
  %835 = vmatprep.mubr.f32.mxu0 0.0
  %836 = vmatmul.mubr.f32.gmra.mrb[0].mxu0 %v708
  %v837 = vpop.f32.mrb[0].mxu0
  %v838 = vadd.f32 %v645, %v837
  %v839 = vpop.f32.mrb[0].mxu0
  %840 = vmatprep.mubr.f32.mxu0 0.0
  %841 = vmatmul.mubr.f32.gmra.mrb[0].mxu0 %v711
  %v842 = vpop.f32.mrb[0].mxu0
  %v843 = vadd.f32 %v650, %v842
  %v844 = vpop.f32.mrb[0].mxu0
  %845 = vmatprep.mubr.f32.mxu0 0.0
  %846 = vmatmul.mubr.f32.gmra.mrb[0].mxu0 %v714
  %v847 = vpop.f32.mrb[0].mxu0
  %v848 = vadd.f32 %v655, %v847
  %v849 = vpop.f32.mrb[0].mxu0
  %850 = vmatprep.mubr.f32.mxu0 0.0
  %851 = vmatmul.mubr.f32.gmra.mrb[0].mxu0 %v717
  %v852 = vpop.f32.mrb[0].mxu0
  %v853 = vadd.f32 %v660, %v852
  %v854 = vpop.f32.mrb[0].mxu0
  %855 = vmatprep.mubr.f32.mxu0 0.0
  %856 = vmatmul.mubr.f32.gmra.mrb[0].mxu0 %v720
  %v857 = vpop.f32.mrb[0].mxu0
  %v858 = vadd.f32 %v665, %v857
  %v859 = vpop.f32.mrb[0].mxu0
  %860 = vmatprep.mubr.f32.mxu0 0.0
  %861 = vmatmul.mubr.f32.gmra.mrb[0].mxu0 %v723
  %v862 = vpop.f32.mrb[0].mxu0
  %v863 = vadd.f32 %v670, %v862
  %v864 = vpop.f32.mrb[0].mxu0
  %865 = vmatprep.mubr.f32.mxu0 0.0
  %866 = vmatmul.mubr.f32.gmra.mrb[0].mxu0 %v726
  %v867 = vpop.f32.mrb[0].mxu0
  %v868 = vadd.f32 %v675, %v867
  %v869 = vpop.f32.mrb[0].mxu0
  %870 = vmatprep.mubr.f32.mxu0 0.0
  %871 = vmatmul.mubr.f32.gmra.mrb[0].mxu0 %v729
  %v872 = vpop.f32.mrb[0].mxu0
  %v873 = vadd.f32 %v680, %v872
  %v874 = vpop.f32.mrb[0].mxu0
  %875 = vdwg.mxu0
  %v876 = vld [vmem:[%s8] sm:$0xff]
  %v877 = vld [vmem:[%s8 + $0x8] sm:$0xff]
  %v878 = vld [vmem:[%s8 + $0x10] sm:$0xff]
  %v879 = vld [vmem:[%s8 + $0x18] sm:$0xff]
  %v880 = vld [vmem:[%s8 + $0x20] sm:$0xff]
  %v881 = vld [vmem:[%s8 + $0x28] sm:$0xff]
  %v882 = vld [vmem:[%s8 + $0x30] sm:$0xff]
  %v883 = vld [vmem:[%s8 + $0x38] sm:$0xff]
  %v885 = vsel %vm45, %v371, 0
  %v888 = vsel %vm45, %v376, 0
  %v891 = vsel %vm45, %v381, 0
  %v894 = vsel %vm45, %v386, 0
  %v897 = vsel %vm45, %v391, 0
  %v900 = vsel %vm45, %v396, 0
  %v903 = vsel %vm45, %v401, 0
  %v906 = vsel %vm45, %v406, 0
  %v909 = vsel %vm45, %v411, 0
  %v912 = vsel %vm45, %v416, 0
  %v915 = vsel %vm45, %v421, 0
  %v918 = vsel %vm45, %v426, 0
  %v921 = vsel %vm45, %v431, 0
  %v924 = vsel %vm45, %v436, 0
  %v927 = vsel %vm45, %v441, 0
  %v930 = vsel %vm45, %v446, 0
  %932 = vmatprep.subr.mxu0 0.0
  %933 = vmatpush1.msra.mxu0 %v876
  %934 = vmatprep.subr.mxu0 0.0
  %935 = vmatpush1.msra.mxu0 %v877
  %936 = vmatprep.subr.mxu0 0.0
  %937 = vmatpush1.msra.mxu0 %v878
  %938 = vmatprep.subr.mxu0 0.0
  %939 = vmatpush1.msra.mxu0 %v879
  %940 = vmatprep.subr.mxu0 0.0
  %941 = vmatpush1.msra.mxu0 %v880
  %942 = vmatprep.subr.mxu0 0.0
  %943 = vmatpush1.msra.mxu0 %v881
  %944 = vmatprep.subr.mxu0 0.0
  %945 = vmatpush1.msra.mxu0 %v882
  %946 = vmatprep.subr.mxu0 0.0
  %947 = vmatpush1.msra.mxu0 %v883
  %948 = vmatprep.subr.mxu0 0.0
  %949 = vmatpush1.msra.mxu0 0.0
  %950 = vmatprep.subr.mxu0 0.0
  %951 = vmatpush1.msra.mxu0 0.0
  %952 = vmatprep.subr.mxu0 0.0
  %953 = vmatpush1.msra.mxu0 0.0
  %954 = vmatprep.subr.mxu0 0.0
  %955 = vmatpush1.msra.mxu0 0.0
  %956 = vmatprep.subr.mxu0 0.0
  %957 = vmatpush1.msra.mxu0 0.0
  %958 = vmatprep.subr.mxu0 0.0
  %959 = vmatpush1.msra.mxu0 0.0
  %960 = vmatprep.subr.mxu0 0.0
  %961 = vmatpush1.msra.mxu0 0.0
  %962 = vmatprep.subr.mxu0 0.0
  %963 = vmatpush1.msra.mxu0 0.0
  %964 = vmatprep.subr.mxu0 0.0
  %965 = vmatpush1.msra.mxu0 0.0
  %966 = vmatprep.subr.mxu0 0.0
  %967 = vmatpush1.msra.mxu0 0.0
  %968 = vmatprep.subr.mxu0 0.0
  %969 = vmatpush1.msra.mxu0 0.0
  %970 = vmatprep.subr.mxu0 0.0
  %971 = vmatpush1.msra.mxu0 0.0
  %972 = vmatprep.subr.mxu0 0.0
  %973 = vmatpush1.msra.mxu0 0.0
  %974 = vmatprep.subr.mxu0 0.0
  %975 = vmatpush1.msra.mxu0 0.0
  %976 = vmatprep.subr.mxu0 0.0
  %977 = vmatpush1.msra.mxu0 0.0
  %978 = vmatprep.subr.mxu0 0.0
  %979 = vmatpush1.msra.mxu0 0.0
  %980 = vmatprep.subr.mxu0 0.0
  %981 = vmatpush1.msra.mxu0 0.0
  %982 = vmatprep.subr.mxu0 0.0
  %983 = vmatpush1.msra.mxu0 0.0
  %984 = vmatprep.subr.mxu0 0.0
  %985 = vmatpush1.msra.mxu0 0.0
  %986 = vmatprep.subr.mxu0 0.0
  %987 = vmatpush1.msra.mxu0 0.0
  %988 = vmatprep.subr.mxu0 0.0
  %989 = vmatpush1.msra.mxu0 0.0
  %990 = vmatprep.subr.mxu0 0.0
  %991 = vmatpush1.msra.mxu0 0.0
  %992 = vmatprep.subr.mxu0 0.0
  %993 = vmatpush1.msra.mxu0 0.0
  %994 = vmatprep.subr.mxu0 0.0
  %995 = vmatpush1.msra.mxu0 0.0
  %996 = vmatprep.mubr.f32.mxu0 0.0
  %997 = vmatmul.mubr.f32.gmra.mrb[0].mxu0 %v885
  %v998 = vpop.f32.mrb[0].mxu0
  %v999 = vadd.f32 0.0, %v998
  %v1000 = vpop.f32.mrb[0].mxu0
  %1001 = vmatprep.mubr.f32.mxu0 0.0
  %1002 = vmatmul.mubr.f32.gmra.mrb[0].mxu0 %v888
  %v1003 = vpop.f32.mrb[0].mxu0
  %v1004 = vadd.f32 0.0, %v1003
  %v1005 = vpop.f32.mrb[0].mxu0
  %1006 = vmatprep.mubr.f32.mxu0 0.0
  %1007 = vmatmul.mubr.f32.gmra.mrb[0].mxu0 %v891
  %v1008 = vpop.f32.mrb[0].mxu0
  %v1009 = vadd.f32 0.0, %v1008
  %v1010 = vpop.f32.mrb[0].mxu0
  %1011 = vmatprep.mubr.f32.mxu0 0.0
  %1012 = vmatmul.mubr.f32.gmra.mrb[0].mxu0 %v894
  %v1013 = vpop.f32.mrb[0].mxu0
  %v1014 = vadd.f32 0.0, %v1013
  %v1015 = vpop.f32.mrb[0].mxu0
  %1016 = vmatprep.mubr.f32.mxu0 0.0
  %1017 = vmatmul.mubr.f32.gmra.mrb[0].mxu0 %v897
  %v1018 = vpop.f32.mrb[0].mxu0
  %v1019 = vadd.f32 0.0, %v1018
  %v1020 = vpop.f32.mrb[0].mxu0
  %1021 = vmatprep.mubr.f32.mxu0 0.0
  %1022 = vmatmul.mubr.f32.gmra.mrb[0].mxu0 %v900
  %v1023 = vpop.f32.mrb[0].mxu0
  %v1024 = vadd.f32 0.0, %v1023
  %v1025 = vpop.f32.mrb[0].mxu0
  %1026 = vmatprep.mubr.f32.mxu0 0.0
  %1027 = vmatmul.mubr.f32.gmra.mrb[0].mxu0 %v903
  %v1028 = vpop.f32.mrb[0].mxu0
  %v1029 = vadd.f32 0.0, %v1028
  %v1030 = vpop.f32.mrb[0].mxu0
  %1031 = vmatprep.mubr.f32.mxu0 0.0
  %1032 = vmatmul.mubr.f32.gmra.mrb[0].mxu0 %v906
  %v1033 = vpop.f32.mrb[0].mxu0
  %v1034 = vadd.f32 0.0, %v1033
  %v1035 = vpop.f32.mrb[0].mxu0
  %1036 = vmatprep.mubr.f32.mxu0 0.0
  %1037 = vmatmul.mubr.f32.gmra.mrb[0].mxu0 %v909
  %v1038 = vpop.f32.mrb[0].mxu0
  %v1039 = vadd.f32 0.0, %v1038
  %v1040 = vpop.f32.mrb[0].mxu0
  %1041 = vmatprep.mubr.f32.mxu0 0.0
  %1042 = vmatmul.mubr.f32.gmra.mrb[0].mxu0 %v912
  %v1043 = vpop.f32.mrb[0].mxu0
  %v1044 = vadd.f32 0.0, %v1043
  %v1045 = vpop.f32.mrb[0].mxu0
  %1046 = vmatprep.mubr.f32.mxu0 0.0
  %1047 = vmatmul.mubr.f32.gmra.mrb[0].mxu0 %v915
  %v1048 = vpop.f32.mrb[0].mxu0
  %v1049 = vadd.f32 0.0, %v1048
  %v1050 = vpop.f32.mrb[0].mxu0
  %1051 = vmatprep.mubr.f32.mxu0 0.0
  %1052 = vmatmul.mubr.f32.gmra.mrb[0].mxu0 %v918
  %v1053 = vpop.f32.mrb[0].mxu0
  %v1054 = vadd.f32 0.0, %v1053
  %v1055 = vpop.f32.mrb[0].mxu0
  %1056 = vmatprep.mubr.f32.mxu0 0.0
  %1057 = vmatmul.mubr.f32.gmra.mrb[0].mxu0 %v921
  %v1058 = vpop.f32.mrb[0].mxu0
  %v1059 = vadd.f32 0.0, %v1058
  %v1060 = vpop.f32.mrb[0].mxu0
  %1061 = vmatprep.mubr.f32.mxu0 0.0
  %1062 = vmatmul.mubr.f32.gmra.mrb[0].mxu0 %v924
  %v1063 = vpop.f32.mrb[0].mxu0
  %v1064 = vadd.f32 0.0, %v1063
  %v1065 = vpop.f32.mrb[0].mxu0
  %1066 = vmatprep.mubr.f32.mxu0 0.0
  %1067 = vmatmul.mubr.f32.gmra.mrb[0].mxu0 %v927
  %v1068 = vpop.f32.mrb[0].mxu0
  %v1069 = vadd.f32 0.0, %v1068
  %v1070 = vpop.f32.mrb[0].mxu0
  %1071 = vmatprep.mubr.f32.mxu0 0.0
  %1072 = vmatmul.mubr.f32.gmra.mrb[0].mxu0 %v930
  %v1073 = vpop.f32.mrb[0].mxu0
  %v1074 = vadd.f32 0.0, %v1073
  %v1075 = vpop.f32.mrb[0].mxu0
  %1076 = vdwg.mxu0
  %v1077 = vadd.f32 %v798, %v999
  %v1078 = vadd.f32 %v803, %v1004
  %v1079 = vadd.f32 %v808, %v1009
  %v1080 = vadd.f32 %v813, %v1014
  %v1081 = vadd.f32 %v818, %v1019
  %v1082 = vadd.f32 %v823, %v1024
  %v1083 = vadd.f32 %v828, %v1029
  %v1084 = vadd.f32 %v833, %v1034
  %v1085 = vadd.f32 %v838, %v1039
  %v1086 = vadd.f32 %v843, %v1044
  %v1087 = vadd.f32 %v848, %v1049
  %v1088 = vadd.f32 %v853, %v1054
  %v1089 = vadd.f32 %v858, %v1059
  %v1090 = vadd.f32 %v863, %v1064
  %v1091 = vadd.f32 %v868, %v1069
  %v1092 = vadd.f32 %v873, %v1074
  %v1093 = vld [vmem:[%s9] sm:$0x1]
  %v1095 = vlaneseq
  %v1096 = vshrl.u32 %v1095, 7
  %v1097 = vsub.s32 0, %v1096
  %v1098 = vrot.slane %v1093, %v1097
  %v1100 = vadd.f32 %v1077, %v1098
  %v1101 = vadd.f32 %v1078, %v1098
  %v1102 = vadd.f32 %v1079, %v1098
  %v1103 = vadd.f32 %v1080, %v1098
  %v1104 = vadd.f32 %v1081, %v1098
  %v1105 = vadd.f32 %v1082, %v1098
  %v1106 = vadd.f32 %v1083, %v1098
  %v1107 = vadd.f32 %v1084, %v1098
  %v1108 = vadd.f32 %v1085, %v1098
  %v1109 = vadd.f32 %v1086, %v1098
  %v1110 = vadd.f32 %v1087, %v1098
  %v1111 = vadd.f32 %v1088, %v1098
  %v1112 = vadd.f32 %v1089, %v1098
  %v1113 = vadd.f32 %v1090, %v1098
  %v1114 = vadd.f32 %v1091, %v1098
  %v1115 = vadd.f32 %v1092, %v1098
  %v1116 = vmax.f32 %v1100, 0.0
  %v1117 = vmax.f32 %v1101, 0.0
  %v1118 = vmax.f32 %v1102, 0.0
  %v1119 = vmax.f32 %v1103, 0.0
  %v1120 = vmax.f32 %v1104, 0.0
  %v1121 = vmax.f32 %v1105, 0.0
  %v1122 = vmax.f32 %v1106, 0.0
  %v1123 = vmax.f32 %v1107, 0.0
  %v1124 = vmax.f32 %v1108, 0.0
  %v1125 = vmax.f32 %v1109, 0.0
  %v1126 = vmax.f32 %v1110, 0.0
  %v1127 = vmax.f32 %v1111, 0.0
  %v1128 = vmax.f32 %v1112, 0.0
  %v1129 = vmax.f32 %v1113, 0.0
  %v1130 = vmax.f32 %v1114, 0.0
  %v1131 = vmax.f32 %v1115, 0.0
  %v1132 = vld [vmem:[%s10] sm:$0xff]
  %v1133 = vld [vmem:[%s10 + $0x8] sm:$0xff]
  %v1134 = vld [vmem:[%s10 + $0x10] sm:$0xff]
  %v1135 = vld [vmem:[%s10 + $0x18] sm:$0xff]
  %v1136 = vld [vmem:[%s10 + $0x20] sm:$0xff]
  %v1137 = vld [vmem:[%s10 + $0x28] sm:$0xff]
  %v1138 = vld [vmem:[%s10 + $0x30] sm:$0xff]
  %v1139 = vld [vmem:[%s10 + $0x38] sm:$0xff]
  %v1140 = vld [vmem:[%s10 + $0x40] sm:$0xff]
  %v1141 = vld [vmem:[%s10 + $0x48] sm:$0xff]
  %v1142 = vld [vmem:[%s10 + $0x50] sm:$0xff]
  %v1143 = vld [vmem:[%s10 + $0x58] sm:$0xff]
  %v1144 = vld [vmem:[%s10 + $0x60] sm:$0xff]
  %v1145 = vld [vmem:[%s10 + $0x68] sm:$0xff]
  %v1146 = vld [vmem:[%s10 + $0x70] sm:$0xff]
  %v1147 = vld [vmem:[%s10 + $0x78] sm:$0xff]
  %v1148 = vld [vmem:[%s11] sm:$0x1]
  %v1150 = vlaneseq
  %v1151 = vshrl.u32 %v1150, 7
  %v1152 = vsub.s32 0, %v1151
  %v1153 = vrot.slane %v1148, %v1152
  %1155 = vmatprep.subr.mxu0 0.0
  %1156 = vmatpush1.msra.mxu0 %v1132
  %1157 = vmatprep.subr.mxu0 0.0
  %1158 = vmatpush1.msra.mxu0 %v1133
  %1159 = vmatprep.subr.mxu0 0.0
  %1160 = vmatpush1.msra.mxu0 %v1134
  %1161 = vmatprep.subr.mxu0 0.0
  %1162 = vmatpush1.msra.mxu0 %v1135
  %1163 = vmatprep.subr.mxu0 0.0
  %1164 = vmatpush1.msra.mxu0 %v1136
  %1165 = vmatprep.subr.mxu0 0.0
  %1166 = vmatpush1.msra.mxu0 %v1137
  %1167 = vmatprep.subr.mxu0 0.0
  %1168 = vmatpush1.msra.mxu0 %v1138
  %1169 = vmatprep.subr.mxu0 0.0
  %1170 = vmatpush1.msra.mxu0 %v1139
  %1171 = vmatprep.subr.mxu0 0.0
  %1172 = vmatpush1.msra.mxu0 %v1140
  %1173 = vmatprep.subr.mxu0 0.0
  %1174 = vmatpush1.msra.mxu0 %v1141
  %1175 = vmatprep.subr.mxu0 0.0
  %1176 = vmatpush1.msra.mxu0 %v1142
  %1177 = vmatprep.subr.mxu0 0.0
  %1178 = vmatpush1.msra.mxu0 %v1143
  %1179 = vmatprep.subr.mxu0 0.0
  %1180 = vmatpush1.msra.mxu0 %v1144
  %1181 = vmatprep.subr.mxu0 0.0
  %1182 = vmatpush1.msra.mxu0 %v1145
  %1183 = vmatprep.subr.mxu0 0.0
  %1184 = vmatpush1.msra.mxu0 %v1146
  %1185 = vmatprep.subr.mxu0 0.0
  %1186 = vmatpush1.msra.mxu0 %v1147
  %1187 = vmatprep.subr.mxu0 0.0
  %1188 = vmatpush1.msra.mxu0 0.0
  %1189 = vmatprep.subr.mxu0 0.0
  %1190 = vmatpush1.msra.mxu0 0.0
  %1191 = vmatprep.subr.mxu0 0.0
  %1192 = vmatpush1.msra.mxu0 0.0
  %1193 = vmatprep.subr.mxu0 0.0
  %1194 = vmatpush1.msra.mxu0 0.0
  %1195 = vmatprep.subr.mxu0 0.0
  %1196 = vmatpush1.msra.mxu0 0.0
  %1197 = vmatprep.subr.mxu0 0.0
  %1198 = vmatpush1.msra.mxu0 0.0
  %1199 = vmatprep.subr.mxu0 0.0
  %1200 = vmatpush1.msra.mxu0 0.0
  %1201 = vmatprep.subr.mxu0 0.0
  %1202 = vmatpush1.msra.mxu0 0.0
  %1203 = vmatprep.subr.mxu0 0.0
  %1204 = vmatpush1.msra.mxu0 0.0
  %1205 = vmatprep.subr.mxu0 0.0
  %1206 = vmatpush1.msra.mxu0 0.0
  %1207 = vmatprep.subr.mxu0 0.0
  %1208 = vmatpush1.msra.mxu0 0.0
  %1209 = vmatprep.subr.mxu0 0.0
  %1210 = vmatpush1.msra.mxu0 0.0
  %1211 = vmatprep.subr.mxu0 0.0
  %1212 = vmatpush1.msra.mxu0 0.0
  %1213 = vmatprep.subr.mxu0 0.0
  %1214 = vmatpush1.msra.mxu0 0.0
  %1215 = vmatprep.subr.mxu0 0.0
  %1216 = vmatpush1.msra.mxu0 0.0
  %1217 = vmatprep.subr.mxu0 0.0
  %1218 = vmatpush1.msra.mxu0 0.0
  %1219 = vmatprep.mubr.f32.mxu0 0.0
  %1220 = vmatmul.mubr.f32.gmra.mrb[0].mxu0 %v1116
  %v1221 = vpop.f32.mrb[0].mxu0
  %v1222 = vadd.f32 %v1153, %v1221
  %v1223 = vpop.f32.mrb[0].mxu0
  %1224 = vmatprep.mubr.f32.mxu0 0.0
  %1225 = vmatmul.mubr.f32.gmra.mrb[0].mxu0 %v1117
  %v1226 = vpop.f32.mrb[0].mxu0
  %v1227 = vadd.f32 %v1153, %v1226
  %v1228 = vpop.f32.mrb[0].mxu0
  %1229 = vmatprep.mubr.f32.mxu0 0.0
  %1230 = vmatmul.mubr.f32.gmra.mrb[0].mxu0 %v1118
  %v1231 = vpop.f32.mrb[0].mxu0
  %v1232 = vadd.f32 %v1153, %v1231
  %v1233 = vpop.f32.mrb[0].mxu0
  %1234 = vmatprep.mubr.f32.mxu0 0.0
  %1235 = vmatmul.mubr.f32.gmra.mrb[0].mxu0 %v1119
  %v1236 = vpop.f32.mrb[0].mxu0
  %v1237 = vadd.f32 %v1153, %v1236
  %v1238 = vpop.f32.mrb[0].mxu0
  %1239 = vmatprep.mubr.f32.mxu0 0.0
  %1240 = vmatmul.mubr.f32.gmra.mrb[0].mxu0 %v1120
  %v1241 = vpop.f32.mrb[0].mxu0
  %v1242 = vadd.f32 %v1153, %v1241
  %v1243 = vpop.f32.mrb[0].mxu0
  %1244 = vmatprep.mubr.f32.mxu0 0.0
  %1245 = vmatmul.mubr.f32.gmra.mrb[0].mxu0 %v1121
  %v1246 = vpop.f32.mrb[0].mxu0
  %v1247 = vadd.f32 %v1153, %v1246
  %v1248 = vpop.f32.mrb[0].mxu0
  %1249 = vmatprep.mubr.f32.mxu0 0.0
  %1250 = vmatmul.mubr.f32.gmra.mrb[0].mxu0 %v1122
  %v1251 = vpop.f32.mrb[0].mxu0
  %v1252 = vadd.f32 %v1153, %v1251
  %v1253 = vpop.f32.mrb[0].mxu0
  %1254 = vmatprep.mubr.f32.mxu0 0.0
  %1255 = vmatmul.mubr.f32.gmra.mrb[0].mxu0 %v1123
  %v1256 = vpop.f32.mrb[0].mxu0
  %v1257 = vadd.f32 %v1153, %v1256
  %v1258 = vpop.f32.mrb[0].mxu0
  %1259 = vmatprep.mubr.f32.mxu0 0.0
  %1260 = vmatmul.mubr.f32.gmra.mrb[0].mxu0 %v1124
  %v1261 = vpop.f32.mrb[0].mxu0
  %v1262 = vadd.f32 %v1153, %v1261
  %v1263 = vpop.f32.mrb[0].mxu0
  %1264 = vmatprep.mubr.f32.mxu0 0.0
  %1265 = vmatmul.mubr.f32.gmra.mrb[0].mxu0 %v1125
  %v1266 = vpop.f32.mrb[0].mxu0
  %v1267 = vadd.f32 %v1153, %v1266
  %v1268 = vpop.f32.mrb[0].mxu0
  %1269 = vmatprep.mubr.f32.mxu0 0.0
  %1270 = vmatmul.mubr.f32.gmra.mrb[0].mxu0 %v1126
  %v1271 = vpop.f32.mrb[0].mxu0
  %v1272 = vadd.f32 %v1153, %v1271
  %v1273 = vpop.f32.mrb[0].mxu0
  %1274 = vmatprep.mubr.f32.mxu0 0.0
  %1275 = vmatmul.mubr.f32.gmra.mrb[0].mxu0 %v1127
  %v1276 = vpop.f32.mrb[0].mxu0
  %v1277 = vadd.f32 %v1153, %v1276
  %v1278 = vpop.f32.mrb[0].mxu0
  %1279 = vmatprep.mubr.f32.mxu0 0.0
  %1280 = vmatmul.mubr.f32.gmra.mrb[0].mxu0 %v1128
  %v1281 = vpop.f32.mrb[0].mxu0
  %v1282 = vadd.f32 %v1153, %v1281
  %v1283 = vpop.f32.mrb[0].mxu0
  %1284 = vmatprep.mubr.f32.mxu0 0.0
  %1285 = vmatmul.mubr.f32.gmra.mrb[0].mxu0 %v1129
  %v1286 = vpop.f32.mrb[0].mxu0
  %v1287 = vadd.f32 %v1153, %v1286
  %v1288 = vpop.f32.mrb[0].mxu0
  %1289 = vmatprep.mubr.f32.mxu0 0.0
  %1290 = vmatmul.mubr.f32.gmra.mrb[0].mxu0 %v1130
  %v1291 = vpop.f32.mrb[0].mxu0
  %v1292 = vadd.f32 %v1153, %v1291
  %v1293 = vpop.f32.mrb[0].mxu0
  %1294 = vmatprep.mubr.f32.mxu0 0.0
  %1295 = vmatmul.mubr.f32.gmra.mrb[0].mxu0 %v1131
  %v1296 = vpop.f32.mrb[0].mxu0
  %v1297 = vadd.f32 %v1153, %v1296
  %v1298 = vpop.f32.mrb[0].mxu0
  %1299 = vdwg.mxu0
  %1300 = vst.msk [vmem:[#allocation2] sm:$0xff] %vm45, %v1222
  %1301 = vst.msk [vmem:[#allocation2 + $0x8] sm:$0xff] %vm45, %v1227
  %1302 = vst.msk [vmem:[#allocation2 + $0x10] sm:$0xff] %vm45, %v1232
  %1303 = vst.msk [vmem:[#allocation2 + $0x18] sm:$0xff] %vm45, %v1237
  %1304 = vst.msk [vmem:[#allocation2 + $0x20] sm:$0xff] %vm45, %v1242
  %1305 = vst.msk [vmem:[#allocation2 + $0x28] sm:$0xff] %vm45, %v1247
  %1306 = vst.msk [vmem:[#allocation2 + $0x30] sm:$0xff] %vm45, %v1252
  %1307 = vst.msk [vmem:[#allocation2 + $0x38] sm:$0xff] %vm45, %v1257
  %1308 = vst.msk [vmem:[#allocation2 + $0x40] sm:$0xff] %vm45, %v1262
  %1309 = vst.msk [vmem:[#allocation2 + $0x48] sm:$0xff] %vm45, %v1267
  %1310 = vst.msk [vmem:[#allocation2 + $0x50] sm:$0xff] %vm45, %v1272
  %1311 = vst.msk [vmem:[#allocation2 + $0x58] sm:$0xff] %vm45, %v1277
  %1312 = vst.msk [vmem:[#allocation2 + $0x60] sm:$0xff] %vm45, %v1282
  %1313 = vst.msk [vmem:[#allocation2 + $0x68] sm:$0xff] %vm45, %v1287
  %1314 = vst.msk [vmem:[#allocation2 + $0x70] sm:$0xff] %vm45, %v1292
  %1315 = vst.msk [vmem:[#allocation2 + $0x78] sm:$0xff] %vm45, %v1297
  // While loop
  $region42: #{tpu_custom_call.1} parent=0 // loop_pre_header
    _
  $region43: #{tpu_custom_call.1} parent=0 // loop_header
    %s1317 = sphi 0, %s1319
    %p1318 = scmp.ge.s32.totalorder %s1317, %s44
  $region44: #{tpu_custom_call.1} parent=0 // loop_header_branch
    %1321 = sbr.rel (%p1318) target = $region48
  $region45: #{tpu_custom_call.1} parent=0 // loop_body
    %s1322 = sld [smem:[#allocation4 + %s1317]]
    %s1323 = scalar_lea.vmem [#allocation2], %s1317
    %v1324 = vld [vmem:[%s1323] sm:$0x1]
    %s1325 = scalar_lea.vmem %s12, %s1322
    %vm1326 = vcmask 516096
    %1327 = vst.msk [vmem:[%s1325] sm:$0x1] %vm1326, %v1324
  $region46: #{tpu_custom_call.1} parent=0 // loop_footer
    %s1319 = sadd.s32 %s1317, 1
  $region47: #{tpu_custom_call.1} parent=0 // loop_footer_branch
    %1316 = sbr.rel target = $region43
  $region48: #{tpu_custom_call.1} parent=0 // loop_exit
    _
  // Predicated region
  $region49: #{tpu_custom_call.1} parent=0 // pred_check
    _
  $region50: #{tpu_custom_call.1} parent=0 // pred_check_branch
    %1329 = sbr.rel (0) target = $region52
  $region51: #{tpu_custom_call.1} parent=0 // pred_region
    _
  $region52: #{tpu_custom_call.1} parent=0 // pred_fallthru
    _
  // Predicated region
  $region53: #{tpu_custom_call.1} parent=0 // pred_check
    _
  $region54: #{tpu_custom_call.1} parent=0 // pred_check_branch
    %1331 = sbr.rel (0) target = $region56
  $region55: #{tpu_custom_call.1} parent=0 // pred_region
    _
  $region56: #{tpu_custom_call.1} parent=0 // pred_fallthru
    _

</llo_original>
